<compile_context>
chip_gen: v5e
topology: v5e:2x2
jax: 0.10.0
libtpu: 0.0.40
codegen_flags: <defaults>
</compile_context>

<pallas_src>
import functools

import numpy as np
import jax
import jax.numpy as jnp
from jax import lax
from jax.experimental import pallas as pl
from jax.experimental.pallas import tpu as pltpu


D_PAD = 128          # lane-dense row / output width (multiple of 128)
B_TILE = 32          # batch rows pooled per grid step (amortizes per-step overhead)
GATHER_DEPTH = 8     # in-flight row DMAs on the HBM gather path


def _vmem_capacity_bytes():
    try:
        return int(pltpu.get_tpu_info().vmem_capacity_bytes)
    except Exception:            # conservative default: v7x per-TensorCore VMEM
        return 64 * 1024 * 1024


def _vmem_pool_kernel(len_ref, idx_ref, table_ref, out_ref, *, b_tile, lmax, batch):
    """SUM pooling with the fused table resident in VMEM (dynamic-load gather).

    len_ref   : SMEM [F * batch]          int32 per-(feature,row) bag lengths
    idx_ref   : SMEM [F * batch * lmax]   int32 fused row ids (valid ids left-packed)
    table_ref : VMEM [rows, 128]          fused table (f32 or bf16)
    out_ref   : VMEM (1, b_tile, 128)     f32 output block
    """
    f = pl.program_id(0)
    bt = pl.program_id(1)
    idx_base = f * (batch * lmax) + bt * (b_tile * lmax)
    len_base = f * batch + bt * b_tile

    for b in range(b_tile):                      # static unroll over batch rows
        n = len_ref[len_base + b]                # real bag length -> padding never visited
        row_base = idx_base + b * lmax

        def body(l, acc, row_base=row_base):
            row = idx_ref[row_base + l]
            return acc + table_ref[pl.ds(row, 1), :].astype(jnp.float32)

        acc = lax.fori_loop(0, n, body, jnp.zeros((1, D_PAD), jnp.float32))
        out_ref[0, b:b + 1, :] = acc.astype(out_ref.dtype)    # static-index sublane store


def _hbm_pool_kernel(len_ref, idx_ref, table_hbm, out_ref, row_buf, sem,
                     *, b_tile, lmax, batch):
    """SUM pooling with the table in HBM; per-row gathers via a depth-8 DMA pipeline.

    row_buf : VMEM (GATHER_DEPTH, 1, 128) gathered-row ring buffer
    sem     : DMA semaphores (GATHER_DEPTH,)
    """
    f = pl.program_id(0)
    bt = pl.program_id(1)
    idx_base = f * (batch * lmax) + bt * (b_tile * lmax)
    len_base = f * batch + bt * b_tile

    for b in range(b_tile):                      # static unroll over batch rows
        n = len_ref[len_base + b]
        row_base = idx_base + b * lmax

        def start(slot_l, buf_slot, row_base=row_base):
            row = idx_ref[row_base + slot_l]
            pltpu.make_async_copy(table_hbm.at[pl.ds(row, 1)],
                                  row_buf.at[buf_slot], sem.at[buf_slot]).start()

        # Prime up to GATHER_DEPTH-1 outstanding row gathers for this bag.
        for l in range(GATHER_DEPTH - 1):
            @pl.when(l < n)
            def _(l=l):
                start(l, l % GATHER_DEPTH)

        def body(l, acc):
            nxt = l + (GATHER_DEPTH - 1)
            # Issue the next gather *before* the wait so all SMEM index reads stay
            # ahead of the DMA wait (wait breaks SMEM sst->sld forwarding) and
            # GATHER_DEPTH-1 copies remain in flight.
            @pl.when(nxt < n)
            def _():
                start(nxt, nxt % GATHER_DEPTH)
            row = idx_ref[row_base + l]          # single SMEM read, before the wait
            slot = l % GATHER_DEPTH
            # Rebuild the exact descriptor used at start() so start/wait match.
            pltpu.make_async_copy(table_hbm.at[pl.ds(row, 1)],
                                  row_buf.at[slot], sem.at[slot]).wait()
            return acc + row_buf[slot].astype(jnp.float32)

        acc = lax.fori_loop(0, n, body, jnp.zeros((1, D_PAD), jnp.float32))
        out_ref[0, b:b + 1, :] = acc.astype(out_ref.dtype)
        # TODO(synk): pipeline across bag boundaries (compacted per-tile slot list)
        # instead of draining the DMA pipeline at each bag end.


def fused_embedding_bag_sum(len_flat, idx_flat, fused_table, *, num_features, batch,
                            lmax, b_tile=B_TILE, d_pad=D_PAD, vmem_table=None):
    """SUM-pooled embedding bags for ALL features in one fused pallas_call.

    len_flat    : [F * batch]        int32 bag lengths
    idx_flat    : [F * batch * lmax] int32 fused row ids (valid ids left-packed)
    fused_table : [rows, 128]        f32/bf16, rows a multiple of 8
    Returns [F, batch, 128] f32 pooled embeddings.
    """
    assert batch % b_tile == 0
    grid = (num_features, batch // b_tile)
    rows = fused_table.shape[0]
    table_bytes = fused_table.size * fused_table.dtype.itemsize
    cap = _vmem_capacity_bytes()

    if vmem_table is None:
        # Keep the table VMEM-resident when it fits comfortably even double-buffered:
        # ~<=44 MiB table on v5e/v6e (128 MiB VMEM), ~<=20 MiB on v7x (64 MiB).
        # TODO(synk): single-buffer the resident table (pl.Buffered(1)) to raise
        # the threshold toward ~96 MiB (v5e/v6e) / ~40 MiB (v7x).
        vmem_table = (2 * table_bytes + (8 << 20)) <= int(0.75 * cap)

    if vmem_table:
        kernel = functools.partial(_vmem_pool_kernel, b_tile=b_tile, lmax=lmax, batch=batch)
        table_spec = pl.BlockSpec((rows, d_pad), lambda f, bt, lens, idx: (0, 0))
        scratch = []
        vmem_limit = max(32 << 20, min(cap, 2 * table_bytes + (16 << 20)))
    else:
        kernel = functools.partial(_hbm_pool_kernel, b_tile=b_tile, lmax=lmax, batch=batch)
        table_spec = pl.BlockSpec(memory_space=pl.ANY)        # table stays in HBM
        scratch = [pltpu.VMEM((GATHER_DEPTH, 1, d_pad), fused_table.dtype),
                   pltpu.SemaphoreType.DMA((GATHER_DEPTH,))]
        vmem_limit = 32 << 20

    return pl.pallas_call(
        kernel,
        out_shape=jax.ShapeDtypeStruct((num_features, batch, d_pad), jnp.float32),
        grid_spec=pltpu.PrefetchScalarGridSpec(
            # TODO(synk): at production batch sizes, block lengths/indices per
            # (feature, batch-tile) into SMEM instead of scalar-prefetching the
            # whole [F*B*Lmax] array (1-D SMEM pads to next_pow2 bytes).
            num_scalar_prefetch=2,                            # lengths + indices -> SMEM
            grid=grid,
            in_specs=[table_spec],
            out_specs=pl.BlockSpec((1, b_tile, d_pad), lambda f, bt, lens, idx: (f, bt, 0)),
            scratch_shapes=scratch,
        ),
        compiler_params=pltpu.CompilerParams(
            dimension_semantics=("parallel", "parallel"),     # megacore-shardable
            vmem_limit_bytes=int(vmem_limit),
        ),
    )(len_flat, idx_flat, fused_table)


class LargeEmbeddingsJax:
    """JAX/Pallas analog of LargeEmbeddings (EmbeddingBagCollection, SUM pooling).

    sparse_features: dict name -> [B, Lmax_f] int32 padded row ids, -1 = padding,
    valid ids left-packed (the KeyedJaggedTensor -> padded densification is
    host-side glue).  Output = per-feature pooled embeddings concatenated along
    dim 1 (KeyedTensor equivalent); surgery_cut_point is nn.Identity -> no-op.
    """

    def __init__(self, table_cfgs, key, *, force_hbm_table=False):
        self.table_cfgs = table_cfgs
        self.force_hbm_table = force_hbm_table
        any_fp16 = any(t.get("data_type", "FP32") == "FP16" for t in table_cfgs)
        # FP16 torchrec tables -> bf16 fused storage (TPU-native half type).
        # TODO(synk): per-table dtypes / true fp16 storage (single fused dtype kept).
        self.table_dtype = jnp.bfloat16 if any_fp16 else jnp.float32

        self.weights = {}
        rows, row_offsets = [], [0]
        for i, t in enumerate(table_cfgs):
            # TODO(synk): embedding_dim > 128 needs multiple 128-lane column tiles.
            assert t["embedding_dim"] <= D_PAD
            k = jax.random.fold_in(key, i)
            w = jax.random.normal(k, (t["num_embeddings"], t["embedding_dim"]),
                                  jnp.float32) * 0.01
            self.weights[t["name"]] = w
            rows.append(jnp.pad(w, ((0, 0), (0, D_PAD - t["embedding_dim"]))))
            row_offsets.append(row_offsets[-1] + t["num_embeddings"])
        fused = jnp.concatenate(rows, axis=0).astype(self.table_dtype)
        pad_rows = (-fused.shape[0]) % 8
        if pad_rows:
            fused = jnp.pad(fused, ((0, pad_rows), (0, 0)))
        self.fused_table = fused                 # [rows (x8), 128], f32 or bf16
        self.row_offsets = row_offsets

    def __call__(self, sparse_features):
        num_features = len(self.table_cfgs)
        B = next(iter(sparse_features.values())).shape[0]
        b_pad = ((B + B_TILE - 1) // B_TILE) * B_TILE
        lmax = max(1, max(sparse_features[t["name"]].shape[1] for t in self.table_cfgs))

        idx_list, len_list = [], []
        for i, t in enumerate(self.table_cfgs):
            raw = sparse_features[t["name"]].astype(jnp.int32)       # [B, L_f]
            lengths = jnp.sum(raw >= 0, axis=1).astype(jnp.int32)    # bags left-packed
            idx = jnp.where(raw >= 0, raw + self.row_offsets[i], 0)  # 0 (not -1): any
            #                                  stray read stays in-bounds (no OOB DMA)
            idx = jnp.pad(idx, ((0, b_pad - B), (0, lmax - idx.shape[1])))
            lengths = jnp.pad(lengths, (0, b_pad - B))
            idx_list.append(idx)
            len_list.append(lengths)
        idx_flat = jnp.stack(idx_list, axis=0).reshape(-1)           # [F*b_pad*lmax]
        len_flat = jnp.stack(len_list, axis=0).reshape(-1)           # [F*b_pad]

        pooled = fused_embedding_bag_sum(
            len_flat, idx_flat, self.fused_table,
            num_features=num_features, batch=b_pad, lmax=lmax,
            vmem_table=False if self.force_hbm_table else None,
        )                                                            # [F, b_pad, 128] f32

        # TODO(synk): pack multiple small-dim features into one 128-lane slab and/or
        # emit bf16 pooled output to cut padded writeback + slice/concat traffic.
        outs = [pooled[i, :B, :t["embedding_dim"]] for i, t in enumerate(self.table_cfgs)]
        return jnp.concatenate(outs, axis=1)


if __name__ == "__main__":
    key = jax.random.PRNGKey(0)
    B = 8
    table_cfgs = [
        dict(name="t_small", num_embeddings=64, embedding_dim=32, max_len=8),
        dict(name="t_big", num_embeddings=128, embedding_dim=64, max_len=4),
    ]

    # KeyedJaggedTensor-like inputs: per feature, per-row bag lengths + values,
    # densified host-side to -1-padded, left-packed index matrices.
    sparse = {}
    for i, t in enumerate(table_cfgs):
        lmax = t["max_len"]
        k_len, k_val = jax.random.split(jax.random.fold_in(key, 100 + i))
        lengths = np.asarray(jax.random.randint(k_len, (B,), 0, lmax + 1))
        values = np.asarray(jax.random.randint(k_val, (B, lmax), 0, t["num_embeddings"]))
        mask = np.arange(lmax)[None, :] < lengths[:, None]
        sparse[t["name"]] = jnp.asarray(np.where(mask, values, -1).astype(np.int32))

    def reference(model):
        # SUM-pooling reference computed from the model's *stored* (possibly bf16)
        # fused table so both paths are checked tightly in f32.
        ft = np.asarray(model.fused_table.astype(jnp.float32))
        refs = []
        for i, t in enumerate(model.table_cfgs):
            off = model.row_offsets[i]
            padded = np.asarray(sparse[t["name"]])
            out = np.zeros((B, t["embedding_dim"]), np.float32)
            for b in range(B):
                ids = padded[b][padded[b] >= 0]
                if ids.size:
                    out[b] = ft[off + ids, :t["embedding_dim"]].sum(axis=0)
            refs.append(out)
        return np.concatenate(refs, axis=1)

    # Path 1: FP32 tables -> f32 fused table, VMEM-resident fast path (auto-selected).
    model_vmem = LargeEmbeddingsJax(table_cfgs, key)
    out1 = jax.block_until_ready(model_vmem(sparse))
    np.testing.assert_allclose(np.asarray(out1), reference(model_vmem),
                               rtol=1e-5, atol=1e-6)

    # Path 2: FP16 tables -> bf16 fused table, forced HBM gather path with the
    # depth-8 DMA pipeline (what large-vocab tables take, especially on v7x).
    cfgs_fp16 = [dict(c, data_type="FP16") for c in table_cfgs]
    model_hbm = LargeEmbeddingsJax(cfgs_fp16, key, force_hbm_table=True)
    out2 = jax.block_until_ready(model_hbm(sparse))
    np.testing.assert_allclose(np.asarray(out2), reference(model_hbm),
                               rtol=1e-5, atol=1e-6)

    print("KERNEL_OK")
</pallas_src>

<mosaic_0001>
module attributes {stable_mosaic.version = 11 : i64} {
  func.func @_vmem_pool_kernel(%arg0: i32, %arg1: i32, %arg2: memref<64xi32, #tpu.memory_space<smem>>, %arg3: memref<512xi32, #tpu.memory_space<smem>>, %arg4: memref<192x128xf32, #tpu.memory_space<vmem>>, %arg5: memref<1x32x128xf32, #tpu.memory_space<vmem>>) attributes {dimension_semantics = [#tpu.dimension_semantics<parallel>, #tpu.dimension_semantics<parallel>], iteration_bounds = array<i64: 2, 1>, scalar_prefetch = 2 : i64, scratch_operands = 0 : i64, tpu.core_type = #tpu.core_type<tc>, window_params = [{pipeline_mode = #tpu.pipeline_mode<synchronous>, transform_indices = @transform_0, window_bounds = array<i64: 192, 128>}, {transform_indices = @transform_1, window_bounds = array<i64: 1, 32, 128>}]} {
    %c256_i32 = arith.constant 256 : i32
    %0 = arith.muli %arg0, %c256_i32 : i32
    %c256_i32_0 = arith.constant 256 : i32
    %1 = arith.muli %arg1, %c256_i32_0 : i32
    %2 = arith.addi %0, %1 : i32
    %c32_i32 = arith.constant 32 : i32
    %3 = arith.muli %arg0, %c32_i32 : i32
    %c32_i32_1 = arith.constant 32 : i32
    %4 = arith.muli %arg1, %c32_i32_1 : i32
    %5 = arith.addi %3, %4 : i32
    %c0_i32 = arith.constant 0 : i32
    %6 = arith.addi %5, %c0_i32 : i32
    %7 = arith.index_cast %6 : i32 to index
    %8 = memref.load %arg2[%7] : memref<64xi32, #tpu.memory_space<smem>>
    %c0_i32_2 = arith.constant 0 : i32
    %9 = arith.addi %2, %c0_i32_2 : i32
    %cst = arith.constant 0.000000e+00 : f32
    %10 = vector.broadcast %cst : f32 to vector<1x128xf32>
    %c0_i32_3 = arith.constant 0 : i32
    %11 = arith.subi %8, %c0_i32_3 : i32
    %12 = arith.addi %c0_i32_3, %11 : i32
    %c1_i32 = arith.constant 1 : i32
    %13 = scf.for %arg6 = %c0_i32_3 to %12 step %c1_i32 iter_args(%arg7 = %10) -> (vector<1x128xf32>)  : i32 {
      %358 = arith.addi %9, %arg6 : i32
      %359 = arith.index_cast %358 : i32 to index
      %360 = memref.load %arg3[%359] : memref<512xi32, #tpu.memory_space<smem>>
      %361 = arith.index_cast %360 : i32 to index
      %c0_166 = arith.constant 0 : index
      %362 = vector.load %arg4[%361, %c0_166] : memref<192x128xf32, #tpu.memory_space<vmem>>, vector<1x128xf32>
      %363 = arith.addf %arg7, %362 : vector<1x128xf32>
      scf.yield %363 : vector<1x128xf32>
    }
    %c0 = arith.constant 0 : index
    %c0_4 = arith.constant 0 : index
    %c0_5 = arith.constant 0 : index
    %14 = vector.load %arg5[%c0, %c0_4, %c0_5] : memref<1x32x128xf32, #tpu.memory_space<vmem>>, vector<1x1x128xf32>
    %15 = vector.shape_cast %14 : vector<1x1x128xf32> to vector<1x128xf32>
    %16 = vector.shape_cast %13 : vector<1x128xf32> to vector<1x1x128xf32>
    tpu.vector_store %arg5[%c0, %c0_4, %c0_5], %16 {strides = array<i32>} : memref<1x32x128xf32, #tpu.memory_space<vmem>>, vector<1x1x128xf32>,
    %c1_i32_6 = arith.constant 1 : i32
    %17 = arith.addi %5, %c1_i32_6 : i32
    %18 = arith.index_cast %17 : i32 to index
    %19 = memref.load %arg2[%18] : memref<64xi32, #tpu.memory_space<smem>>
    %c8_i32 = arith.constant 8 : i32
    %20 = arith.addi %2, %c8_i32 : i32
    %cst_7 = arith.constant 0.000000e+00 : f32
    %21 = vector.broadcast %cst_7 : f32 to vector<1x128xf32>
    %c0_i32_8 = arith.constant 0 : i32
    %22 = arith.subi %19, %c0_i32_8 : i32
    %23 = arith.addi %c0_i32_8, %22 : i32
    %c1_i32_9 = arith.constant 1 : i32
    %24 = scf.for %arg6 = %c0_i32_8 to %23 step %c1_i32_9 iter_args(%arg7 = %21) -> (vector<1x128xf32>)  : i32 {
      %358 = arith.addi %20, %arg6 : i32
      %359 = arith.index_cast %358 : i32 to index
      %360 = memref.load %arg3[%359] : memref<512xi32, #tpu.memory_space<smem>>
      %361 = arith.index_cast %360 : i32 to index
      %c0_166 = arith.constant 0 : index
      %362 = vector.load %arg4[%361, %c0_166] : memref<192x128xf32, #tpu.memory_space<vmem>>, vector<1x128xf32>
      %363 = arith.addf %arg7, %362 : vector<1x128xf32>
      scf.yield %363 : vector<1x128xf32>
    }
    %c0_10 = arith.constant 0 : index
    %c1 = arith.constant 1 : index
    %c0_11 = arith.constant 0 : index
    %25 = vector.load %arg5[%c0_10, %c1, %c0_11] : memref<1x32x128xf32, #tpu.memory_space<vmem>>, vector<1x1x128xf32>
    %26 = vector.shape_cast %25 : vector<1x1x128xf32> to vector<1x128xf32>
    %27 = vector.shape_cast %24 : vector<1x128xf32> to vector<1x1x128xf32>
    tpu.vector_store %arg5[%c0_10, %c1, %c0_11], %27 {strides = array<i32>} : memref<1x32x128xf32, #tpu.memory_space<vmem>>, vector<1x1x128xf32>,
    %c2_i32 = arith.constant 2 : i32
    %28 = arith.addi %5, %c2_i32 : i32
    %29 = arith.index_cast %28 : i32 to index
    %30 = memref.load %arg2[%29] : memref<64xi32, #tpu.memory_space<smem>>
    %c16_i32 = arith.constant 16 : i32
    %31 = arith.addi %2, %c16_i32 : i32
    %cst_12 = arith.constant 0.000000e+00 : f32
    %32 = vector.broadcast %cst_12 : f32 to vector<1x128xf32>
    %c0_i32_13 = arith.constant 0 : i32
    %33 = arith.subi %30, %c0_i32_13 : i32
    %34 = arith.addi %c0_i32_13, %33 : i32
    %c1_i32_14 = arith.constant 1 : i32
    %35 = scf.for %arg6 = %c0_i32_13 to %34 step %c1_i32_14 iter_args(%arg7 = %32) -> (vector<1x128xf32>)  : i32 {
      %358 = arith.addi %31, %arg6 : i32
      %359 = arith.index_cast %358 : i32 to index
      %360 = memref.load %arg3[%359] : memref<512xi32, #tpu.memory_space<smem>>
      %361 = arith.index_cast %360 : i32 to index
      %c0_166 = arith.constant 0 : index
      %362 = vector.load %arg4[%361, %c0_166] : memref<192x128xf32, #tpu.memory_space<vmem>>, vector<1x128xf32>
      %363 = arith.addf %arg7, %362 : vector<1x128xf32>
      scf.yield %363 : vector<1x128xf32>
    }
    %c0_15 = arith.constant 0 : index
    %c2 = arith.constant 2 : index
    %c0_16 = arith.constant 0 : index
    %36 = vector.load %arg5[%c0_15, %c2, %c0_16] : memref<1x32x128xf32, #tpu.memory_space<vmem>>, vector<1x1x128xf32>
    %37 = vector.shape_cast %36 : vector<1x1x128xf32> to vector<1x128xf32>
    %38 = vector.shape_cast %35 : vector<1x128xf32> to vector<1x1x128xf32>
    tpu.vector_store %arg5[%c0_15, %c2, %c0_16], %38 {strides = array<i32>} : memref<1x32x128xf32, #tpu.memory_space<vmem>>, vector<1x1x128xf32>,
    %c3_i32 = arith.constant 3 : i32
    %39 = arith.addi %5, %c3_i32 : i32
    %40 = arith.index_cast %39 : i32 to index
    %41 = memref.load %arg2[%40] : memref<64xi32, #tpu.memory_space<smem>>
    %c24_i32 = arith.constant 24 : i32
    %42 = arith.addi %2, %c24_i32 : i32
    %cst_17 = arith.constant 0.000000e+00 : f32
    %43 = vector.broadcast %cst_17 : f32 to vector<1x128xf32>
    %c0_i32_18 = arith.constant 0 : i32
    %44 = arith.subi %41, %c0_i32_18 : i32
    %45 = arith.addi %c0_i32_18, %44 : i32
    %c1_i32_19 = arith.constant 1 : i32
    %46 = scf.for %arg6 = %c0_i32_18 to %45 step %c1_i32_19 iter_args(%arg7 = %43) -> (vector<1x128xf32>)  : i32 {
      %358 = arith.addi %42, %arg6 : i32
      %359 = arith.index_cast %358 : i32 to index
      %360 = memref.load %arg3[%359] : memref<512xi32, #tpu.memory_space<smem>>
      %361 = arith.index_cast %360 : i32 to index
      %c0_166 = arith.constant 0 : index
      %362 = vector.load %arg4[%361, %c0_166] : memref<192x128xf32, #tpu.memory_space<vmem>>, vector<1x128xf32>
      %363 = arith.addf %arg7, %362 : vector<1x128xf32>
      scf.yield %363 : vector<1x128xf32>
    }
    %c0_20 = arith.constant 0 : index
    %c3 = arith.constant 3 : index
    %c0_21 = arith.constant 0 : index
    %47 = vector.load %arg5[%c0_20, %c3, %c0_21] : memref<1x32x128xf32, #tpu.memory_space<vmem>>, vector<1x1x128xf32>
    %48 = vector.shape_cast %47 : vector<1x1x128xf32> to vector<1x128xf32>
    %49 = vector.shape_cast %46 : vector<1x128xf32> to vector<1x1x128xf32>
    tpu.vector_store %arg5[%c0_20, %c3, %c0_21], %49 {strides = array<i32>} : memref<1x32x128xf32, #tpu.memory_space<vmem>>, vector<1x1x128xf32>,
    %c4_i32 = arith.constant 4 : i32
    %50 = arith.addi %5, %c4_i32 : i32
    %51 = arith.index_cast %50 : i32 to index
    %52 = memref.load %arg2[%51] : memref<64xi32, #tpu.memory_space<smem>>
    %c32_i32_22 = arith.constant 32 : i32
    %53 = arith.addi %2, %c32_i32_22 : i32
    %cst_23 = arith.constant 0.000000e+00 : f32
    %54 = vector.broadcast %cst_23 : f32 to vector<1x128xf32>
    %c0_i32_24 = arith.constant 0 : i32
    %55 = arith.subi %52, %c0_i32_24 : i32
    %56 = arith.addi %c0_i32_24, %55 : i32
    %c1_i32_25 = arith.constant 1 : i32
    %57 = scf.for %arg6 = %c0_i32_24 to %56 step %c1_i32_25 iter_args(%arg7 = %54) -> (vector<1x128xf32>)  : i32 {
      %358 = arith.addi %53, %arg6 : i32
      %359 = arith.index_cast %358 : i32 to index
      %360 = memref.load %arg3[%359] : memref<512xi32, #tpu.memory_space<smem>>
      %361 = arith.index_cast %360 : i32 to index
      %c0_166 = arith.constant 0 : index
      %362 = vector.load %arg4[%361, %c0_166] : memref<192x128xf32, #tpu.memory_space<vmem>>, vector<1x128xf32>
      %363 = arith.addf %arg7, %362 : vector<1x128xf32>
      scf.yield %363 : vector<1x128xf32>
    }
    %c0_26 = arith.constant 0 : index
    %c4 = arith.constant 4 : index
    %c0_27 = arith.constant 0 : index
    %58 = vector.load %arg5[%c0_26, %c4, %c0_27] : memref<1x32x128xf32, #tpu.memory_space<vmem>>, vector<1x1x128xf32>
    %59 = vector.shape_cast %58 : vector<1x1x128xf32> to vector<1x128xf32>
    %60 = vector.shape_cast %57 : vector<1x128xf32> to vector<1x1x128xf32>
    tpu.vector_store %arg5[%c0_26, %c4, %c0_27], %60 {strides = array<i32>} : memref<1x32x128xf32, #tpu.memory_space<vmem>>, vector<1x1x128xf32>,
    %c5_i32 = arith.constant 5 : i32
    %61 = arith.addi %5, %c5_i32 : i32
    %62 = arith.index_cast %61 : i32 to index
    %63 = memref.load %arg2[%62] : memref<64xi32, #tpu.memory_space<smem>>
    %c40_i32 = arith.constant 40 : i32
    %64 = arith.addi %2, %c40_i32 : i32
    %cst_28 = arith.constant 0.000000e+00 : f32
    %65 = vector.broadcast %cst_28 : f32 to vector<1x128xf32>
    %c0_i32_29 = arith.constant 0 : i32
    %66 = arith.subi %63, %c0_i32_29 : i32
    %67 = arith.addi %c0_i32_29, %66 : i32
    %c1_i32_30 = arith.constant 1 : i32
    %68 = scf.for %arg6 = %c0_i32_29 to %67 step %c1_i32_30 iter_args(%arg7 = %65) -> (vector<1x128xf32>)  : i32 {
      %358 = arith.addi %64, %arg6 : i32
      %359 = arith.index_cast %358 : i32 to index
      %360 = memref.load %arg3[%359] : memref<512xi32, #tpu.memory_space<smem>>
      %361 = arith.index_cast %360 : i32 to index
      %c0_166 = arith.constant 0 : index
      %362 = vector.load %arg4[%361, %c0_166] : memref<192x128xf32, #tpu.memory_space<vmem>>, vector<1x128xf32>
      %363 = arith.addf %arg7, %362 : vector<1x128xf32>
      scf.yield %363 : vector<1x128xf32>
    }
    %c0_31 = arith.constant 0 : index
    %c5 = arith.constant 5 : index
    %c0_32 = arith.constant 0 : index
    %69 = vector.load %arg5[%c0_31, %c5, %c0_32] : memref<1x32x128xf32, #tpu.memory_space<vmem>>, vector<1x1x128xf32>
    %70 = vector.shape_cast %69 : vector<1x1x128xf32> to vector<1x128xf32>
    %71 = vector.shape_cast %68 : vector<1x128xf32> to vector<1x1x128xf32>
    tpu.vector_store %arg5[%c0_31, %c5, %c0_32], %71 {strides = array<i32>} : memref<1x32x128xf32, #tpu.memory_space<vmem>>, vector<1x1x128xf32>,
    %c6_i32 = arith.constant 6 : i32
    %72 = arith.addi %5, %c6_i32 : i32
    %73 = arith.index_cast %72 : i32 to index
    %74 = memref.load %arg2[%73] : memref<64xi32, #tpu.memory_space<smem>>
    %c48_i32 = arith.constant 48 : i32
    %75 = arith.addi %2, %c48_i32 : i32
    %cst_33 = arith.constant 0.000000e+00 : f32
    %76 = vector.broadcast %cst_33 : f32 to vector<1x128xf32>
    %c0_i32_34 = arith.constant 0 : i32
    %77 = arith.subi %74, %c0_i32_34 : i32
    %78 = arith.addi %c0_i32_34, %77 : i32
    %c1_i32_35 = arith.constant 1 : i32
    %79 = scf.for %arg6 = %c0_i32_34 to %78 step %c1_i32_35 iter_args(%arg7 = %76) -> (vector<1x128xf32>)  : i32 {
      %358 = arith.addi %75, %arg6 : i32
      %359 = arith.index_cast %358 : i32 to index
      %360 = memref.load %arg3[%359] : memref<512xi32, #tpu.memory_space<smem>>
      %361 = arith.index_cast %360 : i32 to index
      %c0_166 = arith.constant 0 : index
      %362 = vector.load %arg4[%361, %c0_166] : memref<192x128xf32, #tpu.memory_space<vmem>>, vector<1x128xf32>
      %363 = arith.addf %arg7, %362 : vector<1x128xf32>
      scf.yield %363 : vector<1x128xf32>
    }
    %c0_36 = arith.constant 0 : index
    %c6 = arith.constant 6 : index
    %c0_37 = arith.constant 0 : index
    %80 = vector.load %arg5[%c0_36, %c6, %c0_37] : memref<1x32x128xf32, #tpu.memory_space<vmem>>, vector<1x1x128xf32>
    %81 = vector.shape_cast %80 : vector<1x1x128xf32> to vector<1x128xf32>
    %82 = vector.shape_cast %79 : vector<1x128xf32> to vector<1x1x128xf32>
    tpu.vector_store %arg5[%c0_36, %c6, %c0_37], %82 {strides = array<i32>} : memref<1x32x128xf32, #tpu.memory_space<vmem>>, vector<1x1x128xf32>,
    %c7_i32 = arith.constant 7 : i32
    %83 = arith.addi %5, %c7_i32 : i32
    %84 = arith.index_cast %83 : i32 to index
    %85 = memref.load %arg2[%84] : memref<64xi32, #tpu.memory_space<smem>>
    %c56_i32 = arith.constant 56 : i32
    %86 = arith.addi %2, %c56_i32 : i32
    %cst_38 = arith.constant 0.000000e+00 : f32
    %87 = vector.broadcast %cst_38 : f32 to vector<1x128xf32>
    %c0_i32_39 = arith.constant 0 : i32
    %88 = arith.subi %85, %c0_i32_39 : i32
    %89 = arith.addi %c0_i32_39, %88 : i32
    %c1_i32_40 = arith.constant 1 : i32
    %90 = scf.for %arg6 = %c0_i32_39 to %89 step %c1_i32_40 iter_args(%arg7 = %87) -> (vector<1x128xf32>)  : i32 {
      %358 = arith.addi %86, %arg6 : i32
      %359 = arith.index_cast %358 : i32 to index
      %360 = memref.load %arg3[%359] : memref<512xi32, #tpu.memory_space<smem>>
      %361 = arith.index_cast %360 : i32 to index
      %c0_166 = arith.constant 0 : index
      %362 = vector.load %arg4[%361, %c0_166] : memref<192x128xf32, #tpu.memory_space<vmem>>, vector<1x128xf32>
      %363 = arith.addf %arg7, %362 : vector<1x128xf32>
      scf.yield %363 : vector<1x128xf32>
    }
    %c0_41 = arith.constant 0 : index
    %c7 = arith.constant 7 : index
    %c0_42 = arith.constant 0 : index
    %91 = vector.load %arg5[%c0_41, %c7, %c0_42] : memref<1x32x128xf32, #tpu.memory_space<vmem>>, vector<1x1x128xf32>
    %92 = vector.shape_cast %91 : vector<1x1x128xf32> to vector<1x128xf32>
    %93 = vector.shape_cast %90 : vector<1x128xf32> to vector<1x1x128xf32>
    tpu.vector_store %arg5[%c0_41, %c7, %c0_42], %93 {strides = array<i32>} : memref<1x32x128xf32, #tpu.memory_space<vmem>>, vector<1x1x128xf32>,
    %c8_i32_43 = arith.constant 8 : i32
    %94 = arith.addi %5, %c8_i32_43 : i32
    %95 = arith.index_cast %94 : i32 to index
    %96 = memref.load %arg2[%95] : memref<64xi32, #tpu.memory_space<smem>>
    %c64_i32 = arith.constant 64 : i32
    %97 = arith.addi %2, %c64_i32 : i32
    %cst_44 = arith.constant 0.000000e+00 : f32
    %98 = vector.broadcast %cst_44 : f32 to vector<1x128xf32>
    %c0_i32_45 = arith.constant 0 : i32
    %99 = arith.subi %96, %c0_i32_45 : i32
    %100 = arith.addi %c0_i32_45, %99 : i32
    %c1_i32_46 = arith.constant 1 : i32
    %101 = scf.for %arg6 = %c0_i32_45 to %100 step %c1_i32_46 iter_args(%arg7 = %98) -> (vector<1x128xf32>)  : i32 {
      %358 = arith.addi %97, %arg6 : i32
      %359 = arith.index_cast %358 : i32 to index
      %360 = memref.load %arg3[%359] : memref<512xi32, #tpu.memory_space<smem>>
      %361 = arith.index_cast %360 : i32 to index
      %c0_166 = arith.constant 0 : index
      %362 = vector.load %arg4[%361, %c0_166] : memref<192x128xf32, #tpu.memory_space<vmem>>, vector<1x128xf32>
      %363 = arith.addf %arg7, %362 : vector<1x128xf32>
      scf.yield %363 : vector<1x128xf32>
    }
    %c0_47 = arith.constant 0 : index
    %c8 = arith.constant 8 : index
    %c0_48 = arith.constant 0 : index
    %102 = vector.load %arg5[%c0_47, %c8, %c0_48] : memref<1x32x128xf32, #tpu.memory_space<vmem>>, vector<1x1x128xf32>
    %103 = vector.shape_cast %102 : vector<1x1x128xf32> to vector<1x128xf32>
    %104 = vector.shape_cast %101 : vector<1x128xf32> to vector<1x1x128xf32>
    tpu.vector_store %arg5[%c0_47, %c8, %c0_48], %104 {strides = array<i32>} : memref<1x32x128xf32, #tpu.memory_space<vmem>>, vector<1x1x128xf32>,
    %c9_i32 = arith.constant 9 : i32
    %105 = arith.addi %5, %c9_i32 : i32
    %106 = arith.index_cast %105 : i32 to index
    %107 = memref.load %arg2[%106] : memref<64xi32, #tpu.memory_space<smem>>
    %c72_i32 = arith.constant 72 : i32
    %108 = arith.addi %2, %c72_i32 : i32
    %cst_49 = arith.constant 0.000000e+00 : f32
    %109 = vector.broadcast %cst_49 : f32 to vector<1x128xf32>
    %c0_i32_50 = arith.constant 0 : i32
    %110 = arith.subi %107, %c0_i32_50 : i32
    %111 = arith.addi %c0_i32_50, %110 : i32
    %c1_i32_51 = arith.constant 1 : i32
    %112 = scf.for %arg6 = %c0_i32_50 to %111 step %c1_i32_51 iter_args(%arg7 = %109) -> (vector<1x128xf32>)  : i32 {
      %358 = arith.addi %108, %arg6 : i32
      %359 = arith.index_cast %358 : i32 to index
      %360 = memref.load %arg3[%359] : memref<512xi32, #tpu.memory_space<smem>>
      %361 = arith.index_cast %360 : i32 to index
      %c0_166 = arith.constant 0 : index
      %362 = vector.load %arg4[%361, %c0_166] : memref<192x128xf32, #tpu.memory_space<vmem>>, vector<1x128xf32>
      %363 = arith.addf %arg7, %362 : vector<1x128xf32>
      scf.yield %363 : vector<1x128xf32>
    }
    %c0_52 = arith.constant 0 : index
    %c9 = arith.constant 9 : index
    %c0_53 = arith.constant 0 : index
    %113 = vector.load %arg5[%c0_52, %c9, %c0_53] : memref<1x32x128xf32, #tpu.memory_space<vmem>>, vector<1x1x128xf32>
    %114 = vector.shape_cast %113 : vector<1x1x128xf32> to vector<1x128xf32>
    %115 = vector.shape_cast %112 : vector<1x128xf32> to vector<1x1x128xf32>
    tpu.vector_store %arg5[%c0_52, %c9, %c0_53], %115 {strides = array<i32>} : memref<1x32x128xf32, #tpu.memory_space<vmem>>, vector<1x1x128xf32>,
    %c10_i32 = arith.constant 10 : i32
    %116 = arith.addi %5, %c10_i32 : i32
    %117 = arith.index_cast %116 : i32 to index
    %118 = memref.load %arg2[%117] : memref<64xi32, #tpu.memory_space<smem>>
    %c80_i32 = arith.constant 80 : i32
    %119 = arith.addi %2, %c80_i32 : i32
    %cst_54 = arith.constant 0.000000e+00 : f32
    %120 = vector.broadcast %cst_54 : f32 to vector<1x128xf32>
    %c0_i32_55 = arith.constant 0 : i32
    %121 = arith.subi %118, %c0_i32_55 : i32
    %122 = arith.addi %c0_i32_55, %121 : i32
    %c1_i32_56 = arith.constant 1 : i32
    %123 = scf.for %arg6 = %c0_i32_55 to %122 step %c1_i32_56 iter_args(%arg7 = %120) -> (vector<1x128xf32>)  : i32 {
      %358 = arith.addi %119, %arg6 : i32
      %359 = arith.index_cast %358 : i32 to index
      %360 = memref.load %arg3[%359] : memref<512xi32, #tpu.memory_space<smem>>
      %361 = arith.index_cast %360 : i32 to index
      %c0_166 = arith.constant 0 : index
      %362 = vector.load %arg4[%361, %c0_166] : memref<192x128xf32, #tpu.memory_space<vmem>>, vector<1x128xf32>
      %363 = arith.addf %arg7, %362 : vector<1x128xf32>
      scf.yield %363 : vector<1x128xf32>
    }
    %c0_57 = arith.constant 0 : index
    %c10 = arith.constant 10 : index
    %c0_58 = arith.constant 0 : index
    %124 = vector.load %arg5[%c0_57, %c10, %c0_58] : memref<1x32x128xf32, #tpu.memory_space<vmem>>, vector<1x1x128xf32>
    %125 = vector.shape_cast %124 : vector<1x1x128xf32> to vector<1x128xf32>
    %126 = vector.shape_cast %123 : vector<1x128xf32> to vector<1x1x128xf32>
    tpu.vector_store %arg5[%c0_57, %c10, %c0_58], %126 {strides = array<i32>} : memref<1x32x128xf32, #tpu.memory_space<vmem>>, vector<1x1x128xf32>,
    %c11_i32 = arith.constant 11 : i32
    %127 = arith.addi %5, %c11_i32 : i32
    %128 = arith.index_cast %127 : i32 to index
    %129 = memref.load %arg2[%128] : memref<64xi32, #tpu.memory_space<smem>>
    %c88_i32 = arith.constant 88 : i32
    %130 = arith.addi %2, %c88_i32 : i32
    %cst_59 = arith.constant 0.000000e+00 : f32
    %131 = vector.broadcast %cst_59 : f32 to vector<1x128xf32>
    %c0_i32_60 = arith.constant 0 : i32
    %132 = arith.subi %129, %c0_i32_60 : i32
    %133 = arith.addi %c0_i32_60, %132 : i32
    %c1_i32_61 = arith.constant 1 : i32
    %134 = scf.for %arg6 = %c0_i32_60 to %133 step %c1_i32_61 iter_args(%arg7 = %131) -> (vector<1x128xf32>)  : i32 {
      %358 = arith.addi %130, %arg6 : i32
      %359 = arith.index_cast %358 : i32 to index
      %360 = memref.load %arg3[%359] : memref<512xi32, #tpu.memory_space<smem>>
      %361 = arith.index_cast %360 : i32 to index
      %c0_166 = arith.constant 0 : index
      %362 = vector.load %arg4[%361, %c0_166] : memref<192x128xf32, #tpu.memory_space<vmem>>, vector<1x128xf32>
      %363 = arith.addf %arg7, %362 : vector<1x128xf32>
      scf.yield %363 : vector<1x128xf32>
    }
    %c0_62 = arith.constant 0 : index
    %c11 = arith.constant 11 : index
    %c0_63 = arith.constant 0 : index
    %135 = vector.load %arg5[%c0_62, %c11, %c0_63] : memref<1x32x128xf32, #tpu.memory_space<vmem>>, vector<1x1x128xf32>
    %136 = vector.shape_cast %135 : vector<1x1x128xf32> to vector<1x128xf32>
    %137 = vector.shape_cast %134 : vector<1x128xf32> to vector<1x1x128xf32>
    tpu.vector_store %arg5[%c0_62, %c11, %c0_63], %137 {strides = array<i32>} : memref<1x32x128xf32, #tpu.memory_space<vmem>>, vector<1x1x128xf32>,
    %c12_i32 = arith.constant 12 : i32
    %138 = arith.addi %5, %c12_i32 : i32
    %139 = arith.index_cast %138 : i32 to index
    %140 = memref.load %arg2[%139] : memref<64xi32, #tpu.memory_space<smem>>
    %c96_i32 = arith.constant 96 : i32
    %141 = arith.addi %2, %c96_i32 : i32
    %cst_64 = arith.constant 0.000000e+00 : f32
    %142 = vector.broadcast %cst_64 : f32 to vector<1x128xf32>
    %c0_i32_65 = arith.constant 0 : i32
    %143 = arith.subi %140, %c0_i32_65 : i32
    %144 = arith.addi %c0_i32_65, %143 : i32
    %c1_i32_66 = arith.constant 1 : i32
    %145 = scf.for %arg6 = %c0_i32_65 to %144 step %c1_i32_66 iter_args(%arg7 = %142) -> (vector<1x128xf32>)  : i32 {
      %358 = arith.addi %141, %arg6 : i32
      %359 = arith.index_cast %358 : i32 to index
      %360 = memref.load %arg3[%359] : memref<512xi32, #tpu.memory_space<smem>>
      %361 = arith.index_cast %360 : i32 to index
      %c0_166 = arith.constant 0 : index
      %362 = vector.load %arg4[%361, %c0_166] : memref<192x128xf32, #tpu.memory_space<vmem>>, vector<1x128xf32>
      %363 = arith.addf %arg7, %362 : vector<1x128xf32>
      scf.yield %363 : vector<1x128xf32>
    }
    %c0_67 = arith.constant 0 : index
    %c12 = arith.constant 12 : index
    %c0_68 = arith.constant 0 : index
    %146 = vector.load %arg5[%c0_67, %c12, %c0_68] : memref<1x32x128xf32, #tpu.memory_space<vmem>>, vector<1x1x128xf32>
    %147 = vector.shape_cast %146 : vector<1x1x128xf32> to vector<1x128xf32>
    %148 = vector.shape_cast %145 : vector<1x128xf32> to vector<1x1x128xf32>
    tpu.vector_store %arg5[%c0_67, %c12, %c0_68], %148 {strides = array<i32>} : memref<1x32x128xf32, #tpu.memory_space<vmem>>, vector<1x1x128xf32>,
    %c13_i32 = arith.constant 13 : i32
    %149 = arith.addi %5, %c13_i32 : i32
    %150 = arith.index_cast %149 : i32 to index
    %151 = memref.load %arg2[%150] : memref<64xi32, #tpu.memory_space<smem>>
    %c104_i32 = arith.constant 104 : i32
    %152 = arith.addi %2, %c104_i32 : i32
    %cst_69 = arith.constant 0.000000e+00 : f32
    %153 = vector.broadcast %cst_69 : f32 to vector<1x128xf32>
    %c0_i32_70 = arith.constant 0 : i32
    %154 = arith.subi %151, %c0_i32_70 : i32
    %155 = arith.addi %c0_i32_70, %154 : i32
    %c1_i32_71 = arith.constant 1 : i32
    %156 = scf.for %arg6 = %c0_i32_70 to %155 step %c1_i32_71 iter_args(%arg7 = %153) -> (vector<1x128xf32>)  : i32 {
      %358 = arith.addi %152, %arg6 : i32
      %359 = arith.index_cast %358 : i32 to index
      %360 = memref.load %arg3[%359] : memref<512xi32, #tpu.memory_space<smem>>
      %361 = arith.index_cast %360 : i32 to index
      %c0_166 = arith.constant 0 : index
      %362 = vector.load %arg4[%361, %c0_166] : memref<192x128xf32, #tpu.memory_space<vmem>>, vector<1x128xf32>
      %363 = arith.addf %arg7, %362 : vector<1x128xf32>
      scf.yield %363 : vector<1x128xf32>
    }
    %c0_72 = arith.constant 0 : index
    %c13 = arith.constant 13 : index
    %c0_73 = arith.constant 0 : index
    %157 = vector.load %arg5[%c0_72, %c13, %c0_73] : memref<1x32x128xf32, #tpu.memory_space<vmem>>, vector<1x1x128xf32>
    %158 = vector.shape_cast %157 : vector<1x1x128xf32> to vector<1x128xf32>
    %159 = vector.shape_cast %156 : vector<1x128xf32> to vector<1x1x128xf32>
    tpu.vector_store %arg5[%c0_72, %c13, %c0_73], %159 {strides = array<i32>} : memref<1x32x128xf32, #tpu.memory_space<vmem>>, vector<1x1x128xf32>,
    %c14_i32 = arith.constant 14 : i32
    %160 = arith.addi %5, %c14_i32 : i32
    %161 = arith.index_cast %160 : i32 to index
    %162 = memref.load %arg2[%161] : memref<64xi32, #tpu.memory_space<smem>>
    %c112_i32 = arith.constant 112 : i32
    %163 = arith.addi %2, %c112_i32 : i32
    %cst_74 = arith.constant 0.000000e+00 : f32
    %164 = vector.broadcast %cst_74 : f32 to vector<1x128xf32>
    %c0_i32_75 = arith.constant 0 : i32
    %165 = arith.subi %162, %c0_i32_75 : i32
    %166 = arith.addi %c0_i32_75, %165 : i32
    %c1_i32_76 = arith.constant 1 : i32
    %167 = scf.for %arg6 = %c0_i32_75 to %166 step %c1_i32_76 iter_args(%arg7 = %164) -> (vector<1x128xf32>)  : i32 {
      %358 = arith.addi %163, %arg6 : i32
      %359 = arith.index_cast %358 : i32 to index
      %360 = memref.load %arg3[%359] : memref<512xi32, #tpu.memory_space<smem>>
      %361 = arith.index_cast %360 : i32 to index
      %c0_166 = arith.constant 0 : index
      %362 = vector.load %arg4[%361, %c0_166] : memref<192x128xf32, #tpu.memory_space<vmem>>, vector<1x128xf32>
      %363 = arith.addf %arg7, %362 : vector<1x128xf32>
      scf.yield %363 : vector<1x128xf32>
    }
    %c0_77 = arith.constant 0 : index
    %c14 = arith.constant 14 : index
    %c0_78 = arith.constant 0 : index
    %168 = vector.load %arg5[%c0_77, %c14, %c0_78] : memref<1x32x128xf32, #tpu.memory_space<vmem>>, vector<1x1x128xf32>
    %169 = vector.shape_cast %168 : vector<1x1x128xf32> to vector<1x128xf32>
    %170 = vector.shape_cast %167 : vector<1x128xf32> to vector<1x1x128xf32>
    tpu.vector_store %arg5[%c0_77, %c14, %c0_78], %170 {strides = array<i32>} : memref<1x32x128xf32, #tpu.memory_space<vmem>>, vector<1x1x128xf32>,
    %c15_i32 = arith.constant 15 : i32
    %171 = arith.addi %5, %c15_i32 : i32
    %172 = arith.index_cast %171 : i32 to index
    %173 = memref.load %arg2[%172] : memref<64xi32, #tpu.memory_space<smem>>
    %c120_i32 = arith.constant 120 : i32
    %174 = arith.addi %2, %c120_i32 : i32
    %cst_79 = arith.constant 0.000000e+00 : f32
    %175 = vector.broadcast %cst_79 : f32 to vector<1x128xf32>
    %c0_i32_80 = arith.constant 0 : i32
    %176 = arith.subi %173, %c0_i32_80 : i32
    %177 = arith.addi %c0_i32_80, %176 : i32
    %c1_i32_81 = arith.constant 1 : i32
    %178 = scf.for %arg6 = %c0_i32_80 to %177 step %c1_i32_81 iter_args(%arg7 = %175) -> (vector<1x128xf32>)  : i32 {
      %358 = arith.addi %174, %arg6 : i32
      %359 = arith.index_cast %358 : i32 to index
      %360 = memref.load %arg3[%359] : memref<512xi32, #tpu.memory_space<smem>>
      %361 = arith.index_cast %360 : i32 to index
      %c0_166 = arith.constant 0 : index
      %362 = vector.load %arg4[%361, %c0_166] : memref<192x128xf32, #tpu.memory_space<vmem>>, vector<1x128xf32>
      %363 = arith.addf %arg7, %362 : vector<1x128xf32>
      scf.yield %363 : vector<1x128xf32>
    }
    %c0_82 = arith.constant 0 : index
    %c15 = arith.constant 15 : index
    %c0_83 = arith.constant 0 : index
    %179 = vector.load %arg5[%c0_82, %c15, %c0_83] : memref<1x32x128xf32, #tpu.memory_space<vmem>>, vector<1x1x128xf32>
    %180 = vector.shape_cast %179 : vector<1x1x128xf32> to vector<1x128xf32>
    %181 = vector.shape_cast %178 : vector<1x128xf32> to vector<1x1x128xf32>
    tpu.vector_store %arg5[%c0_82, %c15, %c0_83], %181 {strides = array<i32>} : memref<1x32x128xf32, #tpu.memory_space<vmem>>, vector<1x1x128xf32>,
    %c16_i32_84 = arith.constant 16 : i32
    %182 = arith.addi %5, %c16_i32_84 : i32
    %183 = arith.index_cast %182 : i32 to index
    %184 = memref.load %arg2[%183] : memref<64xi32, #tpu.memory_space<smem>>
    %c128_i32 = arith.constant 128 : i32
    %185 = arith.addi %2, %c128_i32 : i32
    %cst_85 = arith.constant 0.000000e+00 : f32
    %186 = vector.broadcast %cst_85 : f32 to vector<1x128xf32>
    %c0_i32_86 = arith.constant 0 : i32
    %187 = arith.subi %184, %c0_i32_86 : i32
    %188 = arith.addi %c0_i32_86, %187 : i32
    %c1_i32_87 = arith.constant 1 : i32
    %189 = scf.for %arg6 = %c0_i32_86 to %188 step %c1_i32_87 iter_args(%arg7 = %186) -> (vector<1x128xf32>)  : i32 {
      %358 = arith.addi %185, %arg6 : i32
      %359 = arith.index_cast %358 : i32 to index
      %360 = memref.load %arg3[%359] : memref<512xi32, #tpu.memory_space<smem>>
      %361 = arith.index_cast %360 : i32 to index
      %c0_166 = arith.constant 0 : index
      %362 = vector.load %arg4[%361, %c0_166] : memref<192x128xf32, #tpu.memory_space<vmem>>, vector<1x128xf32>
      %363 = arith.addf %arg7, %362 : vector<1x128xf32>
      scf.yield %363 : vector<1x128xf32>
    }
    %c0_88 = arith.constant 0 : index
    %c16 = arith.constant 16 : index
    %c0_89 = arith.constant 0 : index
    %190 = vector.load %arg5[%c0_88, %c16, %c0_89] : memref<1x32x128xf32, #tpu.memory_space<vmem>>, vector<1x1x128xf32>
    %191 = vector.shape_cast %190 : vector<1x1x128xf32> to vector<1x128xf32>
    %192 = vector.shape_cast %189 : vector<1x128xf32> to vector<1x1x128xf32>
    tpu.vector_store %arg5[%c0_88, %c16, %c0_89], %192 {strides = array<i32>} : memref<1x32x128xf32, #tpu.memory_space<vmem>>, vector<1x1x128xf32>,
    %c17_i32 = arith.constant 17 : i32
    %193 = arith.addi %5, %c17_i32 : i32
    %194 = arith.index_cast %193 : i32 to index
    %195 = memref.load %arg2[%194] : memref<64xi32, #tpu.memory_space<smem>>
    %c136_i32 = arith.constant 136 : i32
    %196 = arith.addi %2, %c136_i32 : i32
    %cst_90 = arith.constant 0.000000e+00 : f32
    %197 = vector.broadcast %cst_90 : f32 to vector<1x128xf32>
    %c0_i32_91 = arith.constant 0 : i32
    %198 = arith.subi %195, %c0_i32_91 : i32
    %199 = arith.addi %c0_i32_91, %198 : i32
    %c1_i32_92 = arith.constant 1 : i32
    %200 = scf.for %arg6 = %c0_i32_91 to %199 step %c1_i32_92 iter_args(%arg7 = %197) -> (vector<1x128xf32>)  : i32 {
      %358 = arith.addi %196, %arg6 : i32
      %359 = arith.index_cast %358 : i32 to index
      %360 = memref.load %arg3[%359] : memref<512xi32, #tpu.memory_space<smem>>
      %361 = arith.index_cast %360 : i32 to index
      %c0_166 = arith.constant 0 : index
      %362 = vector.load %arg4[%361, %c0_166] : memref<192x128xf32, #tpu.memory_space<vmem>>, vector<1x128xf32>
      %363 = arith.addf %arg7, %362 : vector<1x128xf32>
      scf.yield %363 : vector<1x128xf32>
    }
    %c0_93 = arith.constant 0 : index
    %c17 = arith.constant 17 : index
    %c0_94 = arith.constant 0 : index
    %201 = vector.load %arg5[%c0_93, %c17, %c0_94] : memref<1x32x128xf32, #tpu.memory_space<vmem>>, vector<1x1x128xf32>
    %202 = vector.shape_cast %201 : vector<1x1x128xf32> to vector<1x128xf32>
    %203 = vector.shape_cast %200 : vector<1x128xf32> to vector<1x1x128xf32>
    tpu.vector_store %arg5[%c0_93, %c17, %c0_94], %203 {strides = array<i32>} : memref<1x32x128xf32, #tpu.memory_space<vmem>>, vector<1x1x128xf32>,
    %c18_i32 = arith.constant 18 : i32
    %204 = arith.addi %5, %c18_i32 : i32
    %205 = arith.index_cast %204 : i32 to index
    %206 = memref.load %arg2[%205] : memref<64xi32, #tpu.memory_space<smem>>
    %c144_i32 = arith.constant 144 : i32
    %207 = arith.addi %2, %c144_i32 : i32
    %cst_95 = arith.constant 0.000000e+00 : f32
    %208 = vector.broadcast %cst_95 : f32 to vector<1x128xf32>
    %c0_i32_96 = arith.constant 0 : i32
    %209 = arith.subi %206, %c0_i32_96 : i32
    %210 = arith.addi %c0_i32_96, %209 : i32
    %c1_i32_97 = arith.constant 1 : i32
    %211 = scf.for %arg6 = %c0_i32_96 to %210 step %c1_i32_97 iter_args(%arg7 = %208) -> (vector<1x128xf32>)  : i32 {
      %358 = arith.addi %207, %arg6 : i32
      %359 = arith.index_cast %358 : i32 to index
      %360 = memref.load %arg3[%359] : memref<512xi32, #tpu.memory_space<smem>>
      %361 = arith.index_cast %360 : i32 to index
      %c0_166 = arith.constant 0 : index
      %362 = vector.load %arg4[%361, %c0_166] : memref<192x128xf32, #tpu.memory_space<vmem>>, vector<1x128xf32>
      %363 = arith.addf %arg7, %362 : vector<1x128xf32>
      scf.yield %363 : vector<1x128xf32>
    }
    %c0_98 = arith.constant 0 : index
    %c18 = arith.constant 18 : index
    %c0_99 = arith.constant 0 : index
    %212 = vector.load %arg5[%c0_98, %c18, %c0_99] : memref<1x32x128xf32, #tpu.memory_space<vmem>>, vector<1x1x128xf32>
    %213 = vector.shape_cast %212 : vector<1x1x128xf32> to vector<1x128xf32>
    %214 = vector.shape_cast %211 : vector<1x128xf32> to vector<1x1x128xf32>
    tpu.vector_store %arg5[%c0_98, %c18, %c0_99], %214 {strides = array<i32>} : memref<1x32x128xf32, #tpu.memory_space<vmem>>, vector<1x1x128xf32>,
    %c19_i32 = arith.constant 19 : i32
    %215 = arith.addi %5, %c19_i32 : i32
    %216 = arith.index_cast %215 : i32 to index
    %217 = memref.load %arg2[%216] : memref<64xi32, #tpu.memory_space<smem>>
    %c152_i32 = arith.constant 152 : i32
    %218 = arith.addi %2, %c152_i32 : i32
    %cst_100 = arith.constant 0.000000e+00 : f32
    %219 = vector.broadcast %cst_100 : f32 to vector<1x128xf32>
    %c0_i32_101 = arith.constant 0 : i32
    %220 = arith.subi %217, %c0_i32_101 : i32
    %221 = arith.addi %c0_i32_101, %220 : i32
    %c1_i32_102 = arith.constant 1 : i32
    %222 = scf.for %arg6 = %c0_i32_101 to %221 step %c1_i32_102 iter_args(%arg7 = %219) -> (vector<1x128xf32>)  : i32 {
      %358 = arith.addi %218, %arg6 : i32
      %359 = arith.index_cast %358 : i32 to index
      %360 = memref.load %arg3[%359] : memref<512xi32, #tpu.memory_space<smem>>
      %361 = arith.index_cast %360 : i32 to index
      %c0_166 = arith.constant 0 : index
      %362 = vector.load %arg4[%361, %c0_166] : memref<192x128xf32, #tpu.memory_space<vmem>>, vector<1x128xf32>
      %363 = arith.addf %arg7, %362 : vector<1x128xf32>
      scf.yield %363 : vector<1x128xf32>
    }
    %c0_103 = arith.constant 0 : index
    %c19 = arith.constant 19 : index
    %c0_104 = arith.constant 0 : index
    %223 = vector.load %arg5[%c0_103, %c19, %c0_104] : memref<1x32x128xf32, #tpu.memory_space<vmem>>, vector<1x1x128xf32>
    %224 = vector.shape_cast %223 : vector<1x1x128xf32> to vector<1x128xf32>
    %225 = vector.shape_cast %222 : vector<1x128xf32> to vector<1x1x128xf32>
    tpu.vector_store %arg5[%c0_103, %c19, %c0_104], %225 {strides = array<i32>} : memref<1x32x128xf32, #tpu.memory_space<vmem>>, vector<1x1x128xf32>,
    %c20_i32 = arith.constant 20 : i32
    %226 = arith.addi %5, %c20_i32 : i32
    %227 = arith.index_cast %226 : i32 to index
    %228 = memref.load %arg2[%227] : memref<64xi32, #tpu.memory_space<smem>>
    %c160_i32 = arith.constant 160 : i32
    %229 = arith.addi %2, %c160_i32 : i32
    %cst_105 = arith.constant 0.000000e+00 : f32
    %230 = vector.broadcast %cst_105 : f32 to vector<1x128xf32>
    %c0_i32_106 = arith.constant 0 : i32
    %231 = arith.subi %228, %c0_i32_106 : i32
    %232 = arith.addi %c0_i32_106, %231 : i32
    %c1_i32_107 = arith.constant 1 : i32
    %233 = scf.for %arg6 = %c0_i32_106 to %232 step %c1_i32_107 iter_args(%arg7 = %230) -> (vector<1x128xf32>)  : i32 {
      %358 = arith.addi %229, %arg6 : i32
      %359 = arith.index_cast %358 : i32 to index
      %360 = memref.load %arg3[%359] : memref<512xi32, #tpu.memory_space<smem>>
      %361 = arith.index_cast %360 : i32 to index
      %c0_166 = arith.constant 0 : index
      %362 = vector.load %arg4[%361, %c0_166] : memref<192x128xf32, #tpu.memory_space<vmem>>, vector<1x128xf32>
      %363 = arith.addf %arg7, %362 : vector<1x128xf32>
      scf.yield %363 : vector<1x128xf32>
    }
    %c0_108 = arith.constant 0 : index
    %c20 = arith.constant 20 : index
    %c0_109 = arith.constant 0 : index
    %234 = vector.load %arg5[%c0_108, %c20, %c0_109] : memref<1x32x128xf32, #tpu.memory_space<vmem>>, vector<1x1x128xf32>
    %235 = vector.shape_cast %234 : vector<1x1x128xf32> to vector<1x128xf32>
    %236 = vector.shape_cast %233 : vector<1x128xf32> to vector<1x1x128xf32>
    tpu.vector_store %arg5[%c0_108, %c20, %c0_109], %236 {strides = array<i32>} : memref<1x32x128xf32, #tpu.memory_space<vmem>>, vector<1x1x128xf32>,
    %c21_i32 = arith.constant 21 : i32
    %237 = arith.addi %5, %c21_i32 : i32
    %238 = arith.index_cast %237 : i32 to index
    %239 = memref.load %arg2[%238] : memref<64xi32, #tpu.memory_space<smem>>
    %c168_i32 = arith.constant 168 : i32
    %240 = arith.addi %2, %c168_i32 : i32
    %cst_110 = arith.constant 0.000000e+00 : f32
    %241 = vector.broadcast %cst_110 : f32 to vector<1x128xf32>
    %c0_i32_111 = arith.constant 0 : i32
    %242 = arith.subi %239, %c0_i32_111 : i32
    %243 = arith.addi %c0_i32_111, %242 : i32
    %c1_i32_112 = arith.constant 1 : i32
    %244 = scf.for %arg6 = %c0_i32_111 to %243 step %c1_i32_112 iter_args(%arg7 = %241) -> (vector<1x128xf32>)  : i32 {
      %358 = arith.addi %240, %arg6 : i32
      %359 = arith.index_cast %358 : i32 to index
      %360 = memref.load %arg3[%359] : memref<512xi32, #tpu.memory_space<smem>>
      %361 = arith.index_cast %360 : i32 to index
      %c0_166 = arith.constant 0 : index
      %362 = vector.load %arg4[%361, %c0_166] : memref<192x128xf32, #tpu.memory_space<vmem>>, vector<1x128xf32>
      %363 = arith.addf %arg7, %362 : vector<1x128xf32>
      scf.yield %363 : vector<1x128xf32>
    }
    %c0_113 = arith.constant 0 : index
    %c21 = arith.constant 21 : index
    %c0_114 = arith.constant 0 : index
    %245 = vector.load %arg5[%c0_113, %c21, %c0_114] : memref<1x32x128xf32, #tpu.memory_space<vmem>>, vector<1x1x128xf32>
    %246 = vector.shape_cast %245 : vector<1x1x128xf32> to vector<1x128xf32>
    %247 = vector.shape_cast %244 : vector<1x128xf32> to vector<1x1x128xf32>
    tpu.vector_store %arg5[%c0_113, %c21, %c0_114], %247 {strides = array<i32>} : memref<1x32x128xf32, #tpu.memory_space<vmem>>, vector<1x1x128xf32>,
    %c22_i32 = arith.constant 22 : i32
    %248 = arith.addi %5, %c22_i32 : i32
    %249 = arith.index_cast %248 : i32 to index
    %250 = memref.load %arg2[%249] : memref<64xi32, #tpu.memory_space<smem>>
    %c176_i32 = arith.constant 176 : i32
    %251 = arith.addi %2, %c176_i32 : i32
    %cst_115 = arith.constant 0.000000e+00 : f32
    %252 = vector.broadcast %cst_115 : f32 to vector<1x128xf32>
    %c0_i32_116 = arith.constant 0 : i32
    %253 = arith.subi %250, %c0_i32_116 : i32
    %254 = arith.addi %c0_i32_116, %253 : i32
    %c1_i32_117 = arith.constant 1 : i32
    %255 = scf.for %arg6 = %c0_i32_116 to %254 step %c1_i32_117 iter_args(%arg7 = %252) -> (vector<1x128xf32>)  : i32 {
      %358 = arith.addi %251, %arg6 : i32
      %359 = arith.index_cast %358 : i32 to index
      %360 = memref.load %arg3[%359] : memref<512xi32, #tpu.memory_space<smem>>
      %361 = arith.index_cast %360 : i32 to index
      %c0_166 = arith.constant 0 : index
      %362 = vector.load %arg4[%361, %c0_166] : memref<192x128xf32, #tpu.memory_space<vmem>>, vector<1x128xf32>
      %363 = arith.addf %arg7, %362 : vector<1x128xf32>
      scf.yield %363 : vector<1x128xf32>
    }
    %c0_118 = arith.constant 0 : index
    %c22 = arith.constant 22 : index
    %c0_119 = arith.constant 0 : index
    %256 = vector.load %arg5[%c0_118, %c22, %c0_119] : memref<1x32x128xf32, #tpu.memory_space<vmem>>, vector<1x1x128xf32>
    %257 = vector.shape_cast %256 : vector<1x1x128xf32> to vector<1x128xf32>
    %258 = vector.shape_cast %255 : vector<1x128xf32> to vector<1x1x128xf32>
    tpu.vector_store %arg5[%c0_118, %c22, %c0_119], %258 {strides = array<i32>} : memref<1x32x128xf32, #tpu.memory_space<vmem>>, vector<1x1x128xf32>,
    %c23_i32 = arith.constant 23 : i32
    %259 = arith.addi %5, %c23_i32 : i32
    %260 = arith.index_cast %259 : i32 to index
    %261 = memref.load %arg2[%260] : memref<64xi32, #tpu.memory_space<smem>>
    %c184_i32 = arith.constant 184 : i32
    %262 = arith.addi %2, %c184_i32 : i32
    %cst_120 = arith.constant 0.000000e+00 : f32
    %263 = vector.broadcast %cst_120 : f32 to vector<1x128xf32>
    %c0_i32_121 = arith.constant 0 : i32
    %264 = arith.subi %261, %c0_i32_121 : i32
    %265 = arith.addi %c0_i32_121, %264 : i32
    %c1_i32_122 = arith.constant 1 : i32
    %266 = scf.for %arg6 = %c0_i32_121 to %265 step %c1_i32_122 iter_args(%arg7 = %263) -> (vector<1x128xf32>)  : i32 {
      %358 = arith.addi %262, %arg6 : i32
      %359 = arith.index_cast %358 : i32 to index
      %360 = memref.load %arg3[%359] : memref<512xi32, #tpu.memory_space<smem>>
      %361 = arith.index_cast %360 : i32 to index
      %c0_166 = arith.constant 0 : index
      %362 = vector.load %arg4[%361, %c0_166] : memref<192x128xf32, #tpu.memory_space<vmem>>, vector<1x128xf32>
      %363 = arith.addf %arg7, %362 : vector<1x128xf32>
      scf.yield %363 : vector<1x128xf32>
    }
    %c0_123 = arith.constant 0 : index
    %c23 = arith.constant 23 : index
    %c0_124 = arith.constant 0 : index
    %267 = vector.load %arg5[%c0_123, %c23, %c0_124] : memref<1x32x128xf32, #tpu.memory_space<vmem>>, vector<1x1x128xf32>
    %268 = vector.shape_cast %267 : vector<1x1x128xf32> to vector<1x128xf32>
    %269 = vector.shape_cast %266 : vector<1x128xf32> to vector<1x1x128xf32>
    tpu.vector_store %arg5[%c0_123, %c23, %c0_124], %269 {strides = array<i32>} : memref<1x32x128xf32, #tpu.memory_space<vmem>>, vector<1x1x128xf32>,
    %c24_i32_125 = arith.constant 24 : i32
    %270 = arith.addi %5, %c24_i32_125 : i32
    %271 = arith.index_cast %270 : i32 to index
    %272 = memref.load %arg2[%271] : memref<64xi32, #tpu.memory_space<smem>>
    %c192_i32 = arith.constant 192 : i32
    %273 = arith.addi %2, %c192_i32 : i32
    %cst_126 = arith.constant 0.000000e+00 : f32
    %274 = vector.broadcast %cst_126 : f32 to vector<1x128xf32>
    %c0_i32_127 = arith.constant 0 : i32
    %275 = arith.subi %272, %c0_i32_127 : i32
    %276 = arith.addi %c0_i32_127, %275 : i32
    %c1_i32_128 = arith.constant 1 : i32
    %277 = scf.for %arg6 = %c0_i32_127 to %276 step %c1_i32_128 iter_args(%arg7 = %274) -> (vector<1x128xf32>)  : i32 {
      %358 = arith.addi %273, %arg6 : i32
      %359 = arith.index_cast %358 : i32 to index
      %360 = memref.load %arg3[%359] : memref<512xi32, #tpu.memory_space<smem>>
      %361 = arith.index_cast %360 : i32 to index
      %c0_166 = arith.constant 0 : index
      %362 = vector.load %arg4[%361, %c0_166] : memref<192x128xf32, #tpu.memory_space<vmem>>, vector<1x128xf32>
      %363 = arith.addf %arg7, %362 : vector<1x128xf32>
      scf.yield %363 : vector<1x128xf32>
    }
    %c0_129 = arith.constant 0 : index
    %c24 = arith.constant 24 : index
    %c0_130 = arith.constant 0 : index
    %278 = vector.load %arg5[%c0_129, %c24, %c0_130] : memref<1x32x128xf32, #tpu.memory_space<vmem>>, vector<1x1x128xf32>
    %279 = vector.shape_cast %278 : vector<1x1x128xf32> to vector<1x128xf32>
    %280 = vector.shape_cast %277 : vector<1x128xf32> to vector<1x1x128xf32>
    tpu.vector_store %arg5[%c0_129, %c24, %c0_130], %280 {strides = array<i32>} : memref<1x32x128xf32, #tpu.memory_space<vmem>>, vector<1x1x128xf32>,
    %c25_i32 = arith.constant 25 : i32
    %281 = arith.addi %5, %c25_i32 : i32
    %282 = arith.index_cast %281 : i32 to index
    %283 = memref.load %arg2[%282] : memref<64xi32, #tpu.memory_space<smem>>
    %c200_i32 = arith.constant 200 : i32
    %284 = arith.addi %2, %c200_i32 : i32
    %cst_131 = arith.constant 0.000000e+00 : f32
    %285 = vector.broadcast %cst_131 : f32 to vector<1x128xf32>
    %c0_i32_132 = arith.constant 0 : i32
    %286 = arith.subi %283, %c0_i32_132 : i32
    %287 = arith.addi %c0_i32_132, %286 : i32
    %c1_i32_133 = arith.constant 1 : i32
    %288 = scf.for %arg6 = %c0_i32_132 to %287 step %c1_i32_133 iter_args(%arg7 = %285) -> (vector<1x128xf32>)  : i32 {
      %358 = arith.addi %284, %arg6 : i32
      %359 = arith.index_cast %358 : i32 to index
      %360 = memref.load %arg3[%359] : memref<512xi32, #tpu.memory_space<smem>>
      %361 = arith.index_cast %360 : i32 to index
      %c0_166 = arith.constant 0 : index
      %362 = vector.load %arg4[%361, %c0_166] : memref<192x128xf32, #tpu.memory_space<vmem>>, vector<1x128xf32>
      %363 = arith.addf %arg7, %362 : vector<1x128xf32>
      scf.yield %363 : vector<1x128xf32>
    }
    %c0_134 = arith.constant 0 : index
    %c25 = arith.constant 25 : index
    %c0_135 = arith.constant 0 : index
    %289 = vector.load %arg5[%c0_134, %c25, %c0_135] : memref<1x32x128xf32, #tpu.memory_space<vmem>>, vector<1x1x128xf32>
    %290 = vector.shape_cast %289 : vector<1x1x128xf32> to vector<1x128xf32>
    %291 = vector.shape_cast %288 : vector<1x128xf32> to vector<1x1x128xf32>
    tpu.vector_store %arg5[%c0_134, %c25, %c0_135], %291 {strides = array<i32>} : memref<1x32x128xf32, #tpu.memory_space<vmem>>, vector<1x1x128xf32>,
    %c26_i32 = arith.constant 26 : i32
    %292 = arith.addi %5, %c26_i32 : i32
    %293 = arith.index_cast %292 : i32 to index
    %294 = memref.load %arg2[%293] : memref<64xi32, #tpu.memory_space<smem>>
    %c208_i32 = arith.constant 208 : i32
    %295 = arith.addi %2, %c208_i32 : i32
    %cst_136 = arith.constant 0.000000e+00 : f32
    %296 = vector.broadcast %cst_136 : f32 to vector<1x128xf32>
    %c0_i32_137 = arith.constant 0 : i32
    %297 = arith.subi %294, %c0_i32_137 : i32
    %298 = arith.addi %c0_i32_137, %297 : i32
    %c1_i32_138 = arith.constant 1 : i32
    %299 = scf.for %arg6 = %c0_i32_137 to %298 step %c1_i32_138 iter_args(%arg7 = %296) -> (vector<1x128xf32>)  : i32 {
      %358 = arith.addi %295, %arg6 : i32
      %359 = arith.index_cast %358 : i32 to index
      %360 = memref.load %arg3[%359] : memref<512xi32, #tpu.memory_space<smem>>
      %361 = arith.index_cast %360 : i32 to index
      %c0_166 = arith.constant 0 : index
      %362 = vector.load %arg4[%361, %c0_166] : memref<192x128xf32, #tpu.memory_space<vmem>>, vector<1x128xf32>
      %363 = arith.addf %arg7, %362 : vector<1x128xf32>
      scf.yield %363 : vector<1x128xf32>
    }
    %c0_139 = arith.constant 0 : index
    %c26 = arith.constant 26 : index
    %c0_140 = arith.constant 0 : index
    %300 = vector.load %arg5[%c0_139, %c26, %c0_140] : memref<1x32x128xf32, #tpu.memory_space<vmem>>, vector<1x1x128xf32>
    %301 = vector.shape_cast %300 : vector<1x1x128xf32> to vector<1x128xf32>
    %302 = vector.shape_cast %299 : vector<1x128xf32> to vector<1x1x128xf32>
    tpu.vector_store %arg5[%c0_139, %c26, %c0_140], %302 {strides = array<i32>} : memref<1x32x128xf32, #tpu.memory_space<vmem>>, vector<1x1x128xf32>,
    %c27_i32 = arith.constant 27 : i32
    %303 = arith.addi %5, %c27_i32 : i32
    %304 = arith.index_cast %303 : i32 to index
    %305 = memref.load %arg2[%304] : memref<64xi32, #tpu.memory_space<smem>>
    %c216_i32 = arith.constant 216 : i32
    %306 = arith.addi %2, %c216_i32 : i32
    %cst_141 = arith.constant 0.000000e+00 : f32
    %307 = vector.broadcast %cst_141 : f32 to vector<1x128xf32>
    %c0_i32_142 = arith.constant 0 : i32
    %308 = arith.subi %305, %c0_i32_142 : i32
    %309 = arith.addi %c0_i32_142, %308 : i32
    %c1_i32_143 = arith.constant 1 : i32
    %310 = scf.for %arg6 = %c0_i32_142 to %309 step %c1_i32_143 iter_args(%arg7 = %307) -> (vector<1x128xf32>)  : i32 {
      %358 = arith.addi %306, %arg6 : i32
      %359 = arith.index_cast %358 : i32 to index
      %360 = memref.load %arg3[%359] : memref<512xi32, #tpu.memory_space<smem>>
      %361 = arith.index_cast %360 : i32 to index
      %c0_166 = arith.constant 0 : index
      %362 = vector.load %arg4[%361, %c0_166] : memref<192x128xf32, #tpu.memory_space<vmem>>, vector<1x128xf32>
      %363 = arith.addf %arg7, %362 : vector<1x128xf32>
      scf.yield %363 : vector<1x128xf32>
    }
    %c0_144 = arith.constant 0 : index
    %c27 = arith.constant 27 : index
    %c0_145 = arith.constant 0 : index
    %311 = vector.load %arg5[%c0_144, %c27, %c0_145] : memref<1x32x128xf32, #tpu.memory_space<vmem>>, vector<1x1x128xf32>
    %312 = vector.shape_cast %311 : vector<1x1x128xf32> to vector<1x128xf32>
    %313 = vector.shape_cast %310 : vector<1x128xf32> to vector<1x1x128xf32>
    tpu.vector_store %arg5[%c0_144, %c27, %c0_145], %313 {strides = array<i32>} : memref<1x32x128xf32, #tpu.memory_space<vmem>>, vector<1x1x128xf32>,
    %c28_i32 = arith.constant 28 : i32
    %314 = arith.addi %5, %c28_i32 : i32
    %315 = arith.index_cast %314 : i32 to index
    %316 = memref.load %arg2[%315] : memref<64xi32, #tpu.memory_space<smem>>
    %c224_i32 = arith.constant 224 : i32
    %317 = arith.addi %2, %c224_i32 : i32
    %cst_146 = arith.constant 0.000000e+00 : f32
    %318 = vector.broadcast %cst_146 : f32 to vector<1x128xf32>
    %c0_i32_147 = arith.constant 0 : i32
    %319 = arith.subi %316, %c0_i32_147 : i32
    %320 = arith.addi %c0_i32_147, %319 : i32
    %c1_i32_148 = arith.constant 1 : i32
    %321 = scf.for %arg6 = %c0_i32_147 to %320 step %c1_i32_148 iter_args(%arg7 = %318) -> (vector<1x128xf32>)  : i32 {
      %358 = arith.addi %317, %arg6 : i32
      %359 = arith.index_cast %358 : i32 to index
      %360 = memref.load %arg3[%359] : memref<512xi32, #tpu.memory_space<smem>>
      %361 = arith.index_cast %360 : i32 to index
      %c0_166 = arith.constant 0 : index
      %362 = vector.load %arg4[%361, %c0_166] : memref<192x128xf32, #tpu.memory_space<vmem>>, vector<1x128xf32>
      %363 = arith.addf %arg7, %362 : vector<1x128xf32>
      scf.yield %363 : vector<1x128xf32>
    }
    %c0_149 = arith.constant 0 : index
    %c28 = arith.constant 28 : index
    %c0_150 = arith.constant 0 : index
    %322 = vector.load %arg5[%c0_149, %c28, %c0_150] : memref<1x32x128xf32, #tpu.memory_space<vmem>>, vector<1x1x128xf32>
    %323 = vector.shape_cast %322 : vector<1x1x128xf32> to vector<1x128xf32>
    %324 = vector.shape_cast %321 : vector<1x128xf32> to vector<1x1x128xf32>
    tpu.vector_store %arg5[%c0_149, %c28, %c0_150], %324 {strides = array<i32>} : memref<1x32x128xf32, #tpu.memory_space<vmem>>, vector<1x1x128xf32>,
    %c29_i32 = arith.constant 29 : i32
    %325 = arith.addi %5, %c29_i32 : i32
    %326 = arith.index_cast %325 : i32 to index
    %327 = memref.load %arg2[%326] : memref<64xi32, #tpu.memory_space<smem>>
    %c232_i32 = arith.constant 232 : i32
    %328 = arith.addi %2, %c232_i32 : i32
    %cst_151 = arith.constant 0.000000e+00 : f32
    %329 = vector.broadcast %cst_151 : f32 to vector<1x128xf32>
    %c0_i32_152 = arith.constant 0 : i32
    %330 = arith.subi %327, %c0_i32_152 : i32
    %331 = arith.addi %c0_i32_152, %330 : i32
    %c1_i32_153 = arith.constant 1 : i32
    %332 = scf.for %arg6 = %c0_i32_152 to %331 step %c1_i32_153 iter_args(%arg7 = %329) -> (vector<1x128xf32>)  : i32 {
      %358 = arith.addi %328, %arg6 : i32
      %359 = arith.index_cast %358 : i32 to index
      %360 = memref.load %arg3[%359] : memref<512xi32, #tpu.memory_space<smem>>
      %361 = arith.index_cast %360 : i32 to index
      %c0_166 = arith.constant 0 : index
      %362 = vector.load %arg4[%361, %c0_166] : memref<192x128xf32, #tpu.memory_space<vmem>>, vector<1x128xf32>
      %363 = arith.addf %arg7, %362 : vector<1x128xf32>
      scf.yield %363 : vector<1x128xf32>
    }
    %c0_154 = arith.constant 0 : index
    %c29 = arith.constant 29 : index
    %c0_155 = arith.constant 0 : index
    %333 = vector.load %arg5[%c0_154, %c29, %c0_155] : memref<1x32x128xf32, #tpu.memory_space<vmem>>, vector<1x1x128xf32>
    %334 = vector.shape_cast %333 : vector<1x1x128xf32> to vector<1x128xf32>
    %335 = vector.shape_cast %332 : vector<1x128xf32> to vector<1x1x128xf32>
    tpu.vector_store %arg5[%c0_154, %c29, %c0_155], %335 {strides = array<i32>} : memref<1x32x128xf32, #tpu.memory_space<vmem>>, vector<1x1x128xf32>,
    %c30_i32 = arith.constant 30 : i32
    %336 = arith.addi %5, %c30_i32 : i32
    %337 = arith.index_cast %336 : i32 to index
    %338 = memref.load %arg2[%337] : memref<64xi32, #tpu.memory_space<smem>>
    %c240_i32 = arith.constant 240 : i32
    %339 = arith.addi %2, %c240_i32 : i32
    %cst_156 = arith.constant 0.000000e+00 : f32
    %340 = vector.broadcast %cst_156 : f32 to vector<1x128xf32>
    %c0_i32_157 = arith.constant 0 : i32
    %341 = arith.subi %338, %c0_i32_157 : i32
    %342 = arith.addi %c0_i32_157, %341 : i32
    %c1_i32_158 = arith.constant 1 : i32
    %343 = scf.for %arg6 = %c0_i32_157 to %342 step %c1_i32_158 iter_args(%arg7 = %340) -> (vector<1x128xf32>)  : i32 {
      %358 = arith.addi %339, %arg6 : i32
      %359 = arith.index_cast %358 : i32 to index
      %360 = memref.load %arg3[%359] : memref<512xi32, #tpu.memory_space<smem>>
      %361 = arith.index_cast %360 : i32 to index
      %c0_166 = arith.constant 0 : index
      %362 = vector.load %arg4[%361, %c0_166] : memref<192x128xf32, #tpu.memory_space<vmem>>, vector<1x128xf32>
      %363 = arith.addf %arg7, %362 : vector<1x128xf32>
      scf.yield %363 : vector<1x128xf32>
    }
    %c0_159 = arith.constant 0 : index
    %c30 = arith.constant 30 : index
    %c0_160 = arith.constant 0 : index
    %344 = vector.load %arg5[%c0_159, %c30, %c0_160] : memref<1x32x128xf32, #tpu.memory_space<vmem>>, vector<1x1x128xf32>
    %345 = vector.shape_cast %344 : vector<1x1x128xf32> to vector<1x128xf32>
    %346 = vector.shape_cast %343 : vector<1x128xf32> to vector<1x1x128xf32>
    tpu.vector_store %arg5[%c0_159, %c30, %c0_160], %346 {strides = array<i32>} : memref<1x32x128xf32, #tpu.memory_space<vmem>>, vector<1x1x128xf32>,
    %c31_i32 = arith.constant 31 : i32
    %347 = arith.addi %5, %c31_i32 : i32
    %348 = arith.index_cast %347 : i32 to index
    %349 = memref.load %arg2[%348] : memref<64xi32, #tpu.memory_space<smem>>
    %c248_i32 = arith.constant 248 : i32
    %350 = arith.addi %2, %c248_i32 : i32
    %cst_161 = arith.constant 0.000000e+00 : f32
    %351 = vector.broadcast %cst_161 : f32 to vector<1x128xf32>
    %c0_i32_162 = arith.constant 0 : i32
    %352 = arith.subi %349, %c0_i32_162 : i32
    %353 = arith.addi %c0_i32_162, %352 : i32
    %c1_i32_163 = arith.constant 1 : i32
    %354 = scf.for %arg6 = %c0_i32_162 to %353 step %c1_i32_163 iter_args(%arg7 = %351) -> (vector<1x128xf32>)  : i32 {
      %358 = arith.addi %350, %arg6 : i32
      %359 = arith.index_cast %358 : i32 to index
      %360 = memref.load %arg3[%359] : memref<512xi32, #tpu.memory_space<smem>>
      %361 = arith.index_cast %360 : i32 to index
      %c0_166 = arith.constant 0 : index
      %362 = vector.load %arg4[%361, %c0_166] : memref<192x128xf32, #tpu.memory_space<vmem>>, vector<1x128xf32>
      %363 = arith.addf %arg7, %362 : vector<1x128xf32>
      scf.yield %363 : vector<1x128xf32>
    }
    %c0_164 = arith.constant 0 : index
    %c31 = arith.constant 31 : index
    %c0_165 = arith.constant 0 : index
    %355 = vector.load %arg5[%c0_164, %c31, %c0_165] : memref<1x32x128xf32, #tpu.memory_space<vmem>>, vector<1x1x128xf32>
    %356 = vector.shape_cast %355 : vector<1x1x128xf32> to vector<1x128xf32>
    %357 = vector.shape_cast %354 : vector<1x128xf32> to vector<1x1x128xf32>
    tpu.vector_store %arg5[%c0_164, %c31, %c0_165], %357 {strides = array<i32>} : memref<1x32x128xf32, #tpu.memory_space<vmem>>, vector<1x1x128xf32>,
    return
  }
  func.func @transform_0(%arg0: i32, %arg1: i32, %arg2: memref<64xi32, #tpu.memory_space<smem>>, %arg3: memref<512xi32, #tpu.memory_space<smem>>) -> (i32, i32) {
    %c0_i32 = arith.constant 0 : i32
    %c0_i32_0 = arith.constant 0 : i32
    %c0_i32_1 = arith.constant 0 : i32
    return %c0_i32, %c0_i32_0 : i32, i32
  }
  func.func @transform_1(%arg0: i32, %arg1: i32, %arg2: memref<64xi32, #tpu.memory_space<smem>>, %arg3: memref<512xi32, #tpu.memory_space<smem>>) -> (i32, i32, i32) {
    %c0_i32 = arith.constant 0 : i32
    %c0_i32_0 = arith.constant 0 : i32
    return %arg0, %arg1, %c0_i32 : i32, i32, i32
  }
}

</mosaic_0001>

<llo_original>
// kernel: tpu_custom_call.1
$region0: #{tpu_custom_call.1}
  #allocation0 [shape = 'u32[]', space=smem, size = 0x4, offset = 0x4, fixed_abs, tag = 'smem constant byte address 0x4 - core index']
  #allocation1 [shape = 'u32[72,128]{1,0:T(1,128)}', space=vmem, size = 0x9000, scoped, tag = 'internal scratch']
  #allocation2 [shape = 's32[1]{0}', space=sflag, size = 0x4, scoped, tag = 'scoped memory for tpu_custom_call.1']
  #allocation3 [shape = 'u8[512]{0}', space=smem, size = 0x200, scoped, tag = 'prefetched SMEM operand 0']
  #allocation4 [shape = 'u8[2048]{0}', space=smem, size = 0x800, scoped, tag = 'prefetched SMEM operand 1']
  %s0 = inlined_call_operand.hbm [shape: s32[64], index: 0, kind: input, shape index: {}]
  %s1 = inlined_call_operand.hbm [shape: s32[512], index: 1, kind: input, shape index: {}]
  %s2 = inlined_call_operand.hbm [shape: f32[192,128], index: 2, kind: input, shape index: {}]
  %s3 = inlined_call_operand.hbm [shape: f32[2,32,128], index: 3, kind: output, shape index: {}]
  %s4 = sld [smem:[#allocation0]]
  $region265: #{tpu_custom_call.1} parent=0
    _
  %s6 = ssub.s32 1, %s4
  %s7 = scalar_select 0, %s6, %s4
  %s9 = sshll.u32 %s0, 4
  %s10 = int_to_ptr.hbm [resolvable:$true] %s9
  %12 = dma.hbm_to_smem %s10, 16, [#allocation3], [#allocation2]
  %s14 = sshll.u32 %s1, 4
  %s15 = int_to_ptr.hbm [resolvable:$true] %s14
  %17 = dma.hbm_to_smem %s15, 64, [#allocation4], [#allocation2]
  %19 = dma.done [#allocation2], 80
  %20 = sfence
  $region1: #{tpu_custom_call.1} parent=0
    #allocation5 [shape = 'u8[98304]{0}', space=vmem, size = 0x18000, scoped, tag = 'input window, operand 2, single buffered']
    #allocation6 [shape = 's32[2]{0}', space=sflag, size = 0x8, scoped, tag = 'scoped memory for tpu_custom_call.1']
    #allocation7 [shape = 's32[2]{0}', space=sflag, size = 0x8, scoped, tag = 'scoped memory for tpu_custom_call.1']
    #allocation8 [shape = 'u8[32768]{0}', space=vmem, size = 0x8000, scoped, tag = 'output window, operand 0']
    %21 = vsyncpa [#allocation6], 0
    %22 = vsyncpa [#allocation7], 0
    %s23 = scalar_lea.sflag [#allocation7], 1
    %24 = vsyncpa %s23, 0
    loop: start=0, step=1, limit=4
    $region2: #{tpu_custom_call.1} parent=1 // loop_pre_header
      _
    $region3: #{tpu_custom_call.1} parent=1 // loop_header
      %s26 = sphi 0, %s30
      %p27 = scmp.ge.s32.totalorder %s26, 4
      %s33 = sphi 0, %s45
      %s34 = sphi 0, %s41
      %s35 = sphi 0, %s33
      %s36 = sphi 0, %s34
      %s37 = sphi 0, %s35
      %s38 = sphi 0, %s36
      %s46 = sphi 0, %s46
      %s48 = sphi 0, %s46
      %s49 = sphi 0, %s48
      %s63 = sphi 0, %s49
      %s71 = sphi 0, %s73
      %s74 = sphi 0, %s71
      %s75 = sphi 0, %s74
      %s91 = sphi 0, %s75
    $region4: #{tpu_custom_call.1} parent=1 // loop_header_branch
      %29 = sbr.rel (%p27) target = $region8
    $region5: #{tpu_custom_call.1} parent=1 // loop_body
      %s31 = ssub.s32 %s26, 1
      %s32 = ssub.s32 %s26, 2
      %s39 = sadd.s32 1, %s34
      %p40 = scmp.ge.s32.totalorder %s39, 1
      %s41 = scalar_select %p40, 0, %s39
      %s42 = sadd.s32 1, %s33
      %s43 = scalar_select %p40, %s42, %s33
      %p44 = scmp.ge.s32.totalorder %s43, 2
      %s45 = scalar_select %p44, 0, %s43
      %s47 = sadd.s32 %s46, 1
      %p50 = scmp.eq.s32.totalorder %s26, 1
      %p51 = scmp.ne.s32.totalorder %s46, %s48
      %p52 = scmp.eq.s32.totalorder %s26, 0
      %p53 = por %p51, %p52
      %p54 = scmp.ne.s32.totalorder %s46, %s48
      %p55 = scmp.eq.s32.totalorder %s31, 1
      %p56 = por %p54, %p55
      %p57 = scmp.ne.s32.totalorder %s48, %s49
      %p58 = scmp.eq.s32.totalorder %s31, 0
      %p59 = por %p57, %p58
      %p60 = scmp.ne.s32.totalorder %s48, %s49
      %p61 = scmp.eq.s32.totalorder %s32, 1
      %p62 = por %p60, %p61
      %p64 = scmp.ne.s32.totalorder %s49, %s63
      %p65 = scmp.eq.s32.totalorder %s32, 0
      %p66 = por %p64, %p65
      %s67 = ssub.s32 %s33, %s45
      %s68 = ssub.s32 %s34, %s41
      %s69 = sor.u32 %s67, %s68
      %p70 = scmp.eq.s32.totalorder %s69, 0
      %s72 = sadd.s32 %s71, 1
      %s73 = scalar_select %p70, %s71, %s72
      %p76 = pneg %p70
      %p77 = scmp.eq.s32.totalorder %s26, 1
      %p78 = por %p76, %p77
      %p79 = scmp.ne.s32.totalorder %s71, %s74
      %p80 = scmp.eq.s32.totalorder %s26, 0
      %p81 = por %p79, %p80
      %p82 = scmp.ne.s32.totalorder %s71, %s74
      %p83 = scmp.eq.s32.totalorder %s31, 1
      %p84 = por %p82, %p83
      %p85 = scmp.ne.s32.totalorder %s74, %s75
      %p86 = scmp.eq.s32.totalorder %s31, 0
      %p87 = por %p85, %p86
      %p88 = scmp.ne.s32.totalorder %s74, %s75
      %p89 = scmp.eq.s32.totalorder %s32, 1
      %p90 = por %p88, %p89
      %p92 = scmp.ne.s32.totalorder %s75, %s91
      %p93 = scmp.eq.s32.totalorder %s32, 0
      %p94 = por %p92, %p93
      %p95 = scmp.le.s32.totalorder 1, %s26
      %p96 = scmp.lt.s32.totalorder %s26, 3
      %p97 = pnand %p95, %p96
      %p98 = pneg %p97
      // Predicated region
      $region9: #{tpu_custom_call.1} parent=5 // pred_check
        _
      $region10: #{tpu_custom_call.1} parent=5 // pred_check_branch
        %100 = sbr.rel (%p97) target = $region12
      $region11: #{tpu_custom_call.1} parent=5 // pred_region
        %s101 = ssub.s32 %s26, 1
        // Predicated region
        $region13: #{tpu_custom_call.1} parent=11 // pred_check
          %p102 = pneg %p59
        $region14: #{tpu_custom_call.1} parent=11 // pred_check_branch
          %104 = sbr.rel (%p102) target = $region16
        $region15: #{tpu_custom_call.1} parent=11 // pred_region
          %106 = vsyncadd [#allocation6], 0
          %s107 = sshll.u32 %s2, 4
          %s108 = int_to_ptr.hbm [resolvable:$true] %s107
          %s109 = sshll.u32 [#allocation5], 4
          %s110 = int_to_ptr.vmem [resolvable:$true] %s109
          %115 = dma.hbm_to_vmem [thread:$0]  %s108, 3072, %s110, [#allocation6], 128, 128, 8
        $region16: #{tpu_custom_call.1} parent=11 // pred_fallthru
          _
      $region12: #{tpu_custom_call.1} parent=5 // pred_fallthru
        _
      %p116 = scmp.lt.s32.totalorder %s26, 2
      // Predicated region
      $region17: #{tpu_custom_call.1} parent=5 // pred_check
        %p117 = pneg %p116
      $region18: #{tpu_custom_call.1} parent=5 // pred_check_branch
        %119 = sbr.rel (%p117) target = $region20
      $region19: #{tpu_custom_call.1} parent=5 // pred_region
        _
      $region20: #{tpu_custom_call.1} parent=5 // pred_fallthru
        _
      %p120 = scmp.le.s32.totalorder 1, %s26
      %p121 = scmp.lt.s32.totalorder %s26, 3
      %p122 = pnand %p120, %p121
      %p123 = pneg %p122
      // Predicated region
      $region21: #{tpu_custom_call.1} parent=5 // pred_check
        _
      $region22: #{tpu_custom_call.1} parent=5 // pred_check_branch
        %125 = sbr.rel (%p122) target = $region24
      $region23: #{tpu_custom_call.1} parent=5 // pred_region
        %s126 = ssub.s32 %s26, 1
        // Predicated region
        $region25: #{tpu_custom_call.1} parent=23 // pred_check
          %p127 = pneg %p59
        $region26: #{tpu_custom_call.1} parent=23 // pred_check_branch
          %129 = sbr.rel (%p127) target = $region28
        $region27: #{tpu_custom_call.1} parent=23 // pred_region
          %131 = dma.done [#allocation6], 3072
        $region28: #{tpu_custom_call.1} parent=23 // pred_fallthru
          _
        %p132 = pneg %p59
        %p133 = pneg %p56
        %p134 = pneg %p87
        %p135 = pneg %p84
        %s136 = sand.u32 %s74, 1
        %s137 = scalar_lea.sflag [#allocation7], %s136
        %s138 = sand.u32 %s74, 1
        %s139 = smul.addr %s138, 32
        %s140 = scalar_lea.vmem [#allocation8], %s139
        %s141 = smul.u32 4, %s36
        %s142 = smul.u32 %s35, 256
        %s143 = smul.u32 %s36, 256
        %s144 = sadd.s32 %s142, %s143
        %s145 = smul.u32 %s35, 32
        %s146 = smul.u32 %s36, 32
        %s147 = sadd.s32 %s145, %s146
        %s148 = sld [smem:[#allocation3 + %s147]]
        // While loop
        $region29: #{tpu_custom_call.1} parent=23 // loop_pre_header
          _
        $region30: #{tpu_custom_call.1} parent=23 // loop_header
          %s150 = sphi 0, %s152
          %p151 = scmp.ge.s32.totalorder %s150, %s148
          %v155 = vphi 0.0, %v160
        $region31: #{tpu_custom_call.1} parent=23 // loop_header_branch
          %154 = sbr.rel (%p151) target = $region35
        $region32: #{tpu_custom_call.1} parent=23 // loop_body
          %s156 = sadd.s32 %s144, %s150
          %s157 = sld [smem:[#allocation4 + %s156]]
          %s158 = scalar_lea.vmem [#allocation5], %s157
          %v159 = vld [vmem:[%s158] sm:$0x1]
          %v160 = vadd.f32 %v155, %v159
        $region33: #{tpu_custom_call.1} parent=23 // loop_footer
          %s152 = sadd.s32 %s150, 1
        $region34: #{tpu_custom_call.1} parent=23 // loop_footer_branch
          %149 = sbr.rel target = $region30
        $region35: #{tpu_custom_call.1} parent=23 // loop_exit
          _
        %161 = vst [vmem:[%s140] sm:$0x1] %v155
        %s162 = sadd.s32 %s147, 1
        %s163 = sld [smem:[#allocation3 + %s162]]
        %s164 = sadd.s32 %s144, 8
        // While loop
        $region36: #{tpu_custom_call.1} parent=23 // loop_pre_header
          _
        $region37: #{tpu_custom_call.1} parent=23 // loop_header
          %s166 = sphi 0, %s168
          %p167 = scmp.ge.s32.totalorder %s166, %s163
          %v171 = vphi 0.0, %v176
        $region38: #{tpu_custom_call.1} parent=23 // loop_header_branch
          %170 = sbr.rel (%p167) target = $region42
        $region39: #{tpu_custom_call.1} parent=23 // loop_body
          %s172 = sadd.s32 %s164, %s166
          %s173 = sld [smem:[#allocation4 + %s172]]
          %s174 = scalar_lea.vmem [#allocation5], %s173
          %v175 = vld [vmem:[%s174] sm:$0x1]
          %v176 = vadd.f32 %v171, %v175
        $region40: #{tpu_custom_call.1} parent=23 // loop_footer
          %s168 = sadd.s32 %s166, 1
        $region41: #{tpu_custom_call.1} parent=23 // loop_footer_branch
          %165 = sbr.rel target = $region37
        $region42: #{tpu_custom_call.1} parent=23 // loop_exit
          _
        %177 = vst [vmem:[%s140 + $0x1] sm:$0x1] %v171
        %s178 = sadd.s32 %s147, 2
        %s179 = sld [smem:[#allocation3 + %s178]]
        %s180 = sadd.s32 %s144, 16
        // While loop
        $region43: #{tpu_custom_call.1} parent=23 // loop_pre_header
          _
        $region44: #{tpu_custom_call.1} parent=23 // loop_header
          %s182 = sphi 0, %s184
          %p183 = scmp.ge.s32.totalorder %s182, %s179
          %v187 = vphi 0.0, %v192
        $region45: #{tpu_custom_call.1} parent=23 // loop_header_branch
          %186 = sbr.rel (%p183) target = $region49
        $region46: #{tpu_custom_call.1} parent=23 // loop_body
          %s188 = sadd.s32 %s180, %s182
          %s189 = sld [smem:[#allocation4 + %s188]]
          %s190 = scalar_lea.vmem [#allocation5], %s189
          %v191 = vld [vmem:[%s190] sm:$0x1]
          %v192 = vadd.f32 %v187, %v191
        $region47: #{tpu_custom_call.1} parent=23 // loop_footer
          %s184 = sadd.s32 %s182, 1
        $region48: #{tpu_custom_call.1} parent=23 // loop_footer_branch
          %181 = sbr.rel target = $region44
        $region49: #{tpu_custom_call.1} parent=23 // loop_exit
          _
        %193 = vst [vmem:[%s140 + $0x2] sm:$0x1] %v187
        %s194 = sadd.s32 %s147, 3
        %s195 = sld [smem:[#allocation3 + %s194]]
        %s196 = sadd.s32 %s144, 24
        // While loop
        $region50: #{tpu_custom_call.1} parent=23 // loop_pre_header
          _
        $region51: #{tpu_custom_call.1} parent=23 // loop_header
          %s198 = sphi 0, %s200
          %p199 = scmp.ge.s32.totalorder %s198, %s195
          %v203 = vphi 0.0, %v208
        $region52: #{tpu_custom_call.1} parent=23 // loop_header_branch
          %202 = sbr.rel (%p199) target = $region56
        $region53: #{tpu_custom_call.1} parent=23 // loop_body
          %s204 = sadd.s32 %s196, %s198
          %s205 = sld [smem:[#allocation4 + %s204]]
          %s206 = scalar_lea.vmem [#allocation5], %s205
          %v207 = vld [vmem:[%s206] sm:$0x1]
          %v208 = vadd.f32 %v203, %v207
        $region54: #{tpu_custom_call.1} parent=23 // loop_footer
          %s200 = sadd.s32 %s198, 1
        $region55: #{tpu_custom_call.1} parent=23 // loop_footer_branch
          %197 = sbr.rel target = $region51
        $region56: #{tpu_custom_call.1} parent=23 // loop_exit
          _
        %209 = vst [vmem:[%s140 + $0x3] sm:$0x1] %v203
        %s210 = sadd.s32 %s147, 4
        %s211 = sld [smem:[#allocation3 + %s210]]
        %s212 = sadd.s32 %s144, 32
        // While loop
        $region57: #{tpu_custom_call.1} parent=23 // loop_pre_header
          _
        $region58: #{tpu_custom_call.1} parent=23 // loop_header
          %s214 = sphi 0, %s216
          %p215 = scmp.ge.s32.totalorder %s214, %s211
          %v219 = vphi 0.0, %v224
        $region59: #{tpu_custom_call.1} parent=23 // loop_header_branch
          %218 = sbr.rel (%p215) target = $region63
        $region60: #{tpu_custom_call.1} parent=23 // loop_body
          %s220 = sadd.s32 %s212, %s214
          %s221 = sld [smem:[#allocation4 + %s220]]
          %s222 = scalar_lea.vmem [#allocation5], %s221
          %v223 = vld [vmem:[%s222] sm:$0x1]
          %v224 = vadd.f32 %v219, %v223
        $region61: #{tpu_custom_call.1} parent=23 // loop_footer
          %s216 = sadd.s32 %s214, 1
        $region62: #{tpu_custom_call.1} parent=23 // loop_footer_branch
          %213 = sbr.rel target = $region58
        $region63: #{tpu_custom_call.1} parent=23 // loop_exit
          _
        %225 = vst [vmem:[%s140 + $0x4] sm:$0x1] %v219
        %s226 = sadd.s32 %s147, 5
        %s227 = sld [smem:[#allocation3 + %s226]]
        %s228 = sadd.s32 %s144, 40
        // While loop
        $region64: #{tpu_custom_call.1} parent=23 // loop_pre_header
          _
        $region65: #{tpu_custom_call.1} parent=23 // loop_header
          %s230 = sphi 0, %s232
          %p231 = scmp.ge.s32.totalorder %s230, %s227
          %v235 = vphi 0.0, %v240
        $region66: #{tpu_custom_call.1} parent=23 // loop_header_branch
          %234 = sbr.rel (%p231) target = $region70
        $region67: #{tpu_custom_call.1} parent=23 // loop_body
          %s236 = sadd.s32 %s228, %s230
          %s237 = sld [smem:[#allocation4 + %s236]]
          %s238 = scalar_lea.vmem [#allocation5], %s237
          %v239 = vld [vmem:[%s238] sm:$0x1]
          %v240 = vadd.f32 %v235, %v239
        $region68: #{tpu_custom_call.1} parent=23 // loop_footer
          %s232 = sadd.s32 %s230, 1
        $region69: #{tpu_custom_call.1} parent=23 // loop_footer_branch
          %229 = sbr.rel target = $region65
        $region70: #{tpu_custom_call.1} parent=23 // loop_exit
          _
        %241 = vst [vmem:[%s140 + $0x5] sm:$0x1] %v235
        %s242 = sadd.s32 %s147, 6
        %s243 = sld [smem:[#allocation3 + %s242]]
        %s244 = sadd.s32 %s144, 48
        // While loop
        $region71: #{tpu_custom_call.1} parent=23 // loop_pre_header
          _
        $region72: #{tpu_custom_call.1} parent=23 // loop_header
          %s246 = sphi 0, %s248
          %p247 = scmp.ge.s32.totalorder %s246, %s243
          %v251 = vphi 0.0, %v256
        $region73: #{tpu_custom_call.1} parent=23 // loop_header_branch
          %250 = sbr.rel (%p247) target = $region77
        $region74: #{tpu_custom_call.1} parent=23 // loop_body
          %s252 = sadd.s32 %s244, %s246
          %s253 = sld [smem:[#allocation4 + %s252]]
          %s254 = scalar_lea.vmem [#allocation5], %s253
          %v255 = vld [vmem:[%s254] sm:$0x1]
          %v256 = vadd.f32 %v251, %v255
        $region75: #{tpu_custom_call.1} parent=23 // loop_footer
          %s248 = sadd.s32 %s246, 1
        $region76: #{tpu_custom_call.1} parent=23 // loop_footer_branch
          %245 = sbr.rel target = $region72
        $region77: #{tpu_custom_call.1} parent=23 // loop_exit
          _
        %257 = vst [vmem:[%s140 + $0x6] sm:$0x1] %v251
        %s258 = sadd.s32 %s147, 7
        %s259 = sld [smem:[#allocation3 + %s258]]
        %s260 = sadd.s32 %s144, 56
        // While loop
        $region78: #{tpu_custom_call.1} parent=23 // loop_pre_header
          _
        $region79: #{tpu_custom_call.1} parent=23 // loop_header
          %s262 = sphi 0, %s264
          %p263 = scmp.ge.s32.totalorder %s262, %s259
          %v267 = vphi 0.0, %v272
        $region80: #{tpu_custom_call.1} parent=23 // loop_header_branch
          %266 = sbr.rel (%p263) target = $region84
        $region81: #{tpu_custom_call.1} parent=23 // loop_body
          %s268 = sadd.s32 %s260, %s262
          %s269 = sld [smem:[#allocation4 + %s268]]
          %s270 = scalar_lea.vmem [#allocation5], %s269
          %v271 = vld [vmem:[%s270] sm:$0x1]
          %v272 = vadd.f32 %v267, %v271
        $region82: #{tpu_custom_call.1} parent=23 // loop_footer
          %s264 = sadd.s32 %s262, 1
        $region83: #{tpu_custom_call.1} parent=23 // loop_footer_branch
          %261 = sbr.rel target = $region79
        $region84: #{tpu_custom_call.1} parent=23 // loop_exit
          _
        %273 = vst [vmem:[%s140 + $0x7] sm:$0x1] %v267
        %s274 = sadd.s32 %s147, 8
        %s275 = sld [smem:[#allocation3 + %s274]]
        %s276 = sadd.s32 %s144, 64
        // While loop
        $region85: #{tpu_custom_call.1} parent=23 // loop_pre_header
          _
        $region86: #{tpu_custom_call.1} parent=23 // loop_header
          %s278 = sphi 0, %s280
          %p279 = scmp.ge.s32.totalorder %s278, %s275
          %v283 = vphi 0.0, %v288
        $region87: #{tpu_custom_call.1} parent=23 // loop_header_branch
          %282 = sbr.rel (%p279) target = $region91
        $region88: #{tpu_custom_call.1} parent=23 // loop_body
          %s284 = sadd.s32 %s276, %s278
          %s285 = sld [smem:[#allocation4 + %s284]]
          %s286 = scalar_lea.vmem [#allocation5], %s285
          %v287 = vld [vmem:[%s286] sm:$0x1]
          %v288 = vadd.f32 %v283, %v287
        $region89: #{tpu_custom_call.1} parent=23 // loop_footer
          %s280 = sadd.s32 %s278, 1
        $region90: #{tpu_custom_call.1} parent=23 // loop_footer_branch
          %277 = sbr.rel target = $region86
        $region91: #{tpu_custom_call.1} parent=23 // loop_exit
          _
        %289 = vst [vmem:[%s140 + $0x8] sm:$0x1] %v283
        %s290 = sadd.s32 %s147, 9
        %s291 = sld [smem:[#allocation3 + %s290]]
        %s292 = sadd.s32 %s144, 72
        // While loop
        $region92: #{tpu_custom_call.1} parent=23 // loop_pre_header
          _
        $region93: #{tpu_custom_call.1} parent=23 // loop_header
          %s294 = sphi 0, %s296
          %p295 = scmp.ge.s32.totalorder %s294, %s291
          %v299 = vphi 0.0, %v304
        $region94: #{tpu_custom_call.1} parent=23 // loop_header_branch
          %298 = sbr.rel (%p295) target = $region98
        $region95: #{tpu_custom_call.1} parent=23 // loop_body
          %s300 = sadd.s32 %s292, %s294
          %s301 = sld [smem:[#allocation4 + %s300]]
          %s302 = scalar_lea.vmem [#allocation5], %s301
          %v303 = vld [vmem:[%s302] sm:$0x1]
          %v304 = vadd.f32 %v299, %v303
        $region96: #{tpu_custom_call.1} parent=23 // loop_footer
          %s296 = sadd.s32 %s294, 1
        $region97: #{tpu_custom_call.1} parent=23 // loop_footer_branch
          %293 = sbr.rel target = $region93
        $region98: #{tpu_custom_call.1} parent=23 // loop_exit
          _
        %305 = vst [vmem:[%s140 + $0x9] sm:$0x1] %v299
        %s306 = sadd.s32 %s147, 10
        %s307 = sld [smem:[#allocation3 + %s306]]
        %s308 = sadd.s32 %s144, 80
        // While loop
        $region99: #{tpu_custom_call.1} parent=23 // loop_pre_header
          _
        $region100: #{tpu_custom_call.1} parent=23 // loop_header
          %s310 = sphi 0, %s312
          %p311 = scmp.ge.s32.totalorder %s310, %s307
          %v315 = vphi 0.0, %v320
        $region101: #{tpu_custom_call.1} parent=23 // loop_header_branch
          %314 = sbr.rel (%p311) target = $region105
        $region102: #{tpu_custom_call.1} parent=23 // loop_body
          %s316 = sadd.s32 %s308, %s310
          %s317 = sld [smem:[#allocation4 + %s316]]
          %s318 = scalar_lea.vmem [#allocation5], %s317
          %v319 = vld [vmem:[%s318] sm:$0x1]
          %v320 = vadd.f32 %v315, %v319
        $region103: #{tpu_custom_call.1} parent=23 // loop_footer
          %s312 = sadd.s32 %s310, 1
        $region104: #{tpu_custom_call.1} parent=23 // loop_footer_branch
          %309 = sbr.rel target = $region100
        $region105: #{tpu_custom_call.1} parent=23 // loop_exit
          _
        %321 = vst [vmem:[%s140 + $0xa] sm:$0x1] %v315
        %s322 = sadd.s32 %s147, 11
        %s323 = sld [smem:[#allocation3 + %s322]]
        %s324 = sadd.s32 %s144, 88
        // While loop
        $region106: #{tpu_custom_call.1} parent=23 // loop_pre_header
          _
        $region107: #{tpu_custom_call.1} parent=23 // loop_header
          %s326 = sphi 0, %s328
          %p327 = scmp.ge.s32.totalorder %s326, %s323
          %v331 = vphi 0.0, %v336
        $region108: #{tpu_custom_call.1} parent=23 // loop_header_branch
          %330 = sbr.rel (%p327) target = $region112
        $region109: #{tpu_custom_call.1} parent=23 // loop_body
          %s332 = sadd.s32 %s324, %s326
          %s333 = sld [smem:[#allocation4 + %s332]]
          %s334 = scalar_lea.vmem [#allocation5], %s333
          %v335 = vld [vmem:[%s334] sm:$0x1]
          %v336 = vadd.f32 %v331, %v335
        $region110: #{tpu_custom_call.1} parent=23 // loop_footer
          %s328 = sadd.s32 %s326, 1
        $region111: #{tpu_custom_call.1} parent=23 // loop_footer_branch
          %325 = sbr.rel target = $region107
        $region112: #{tpu_custom_call.1} parent=23 // loop_exit
          _
        %337 = vst [vmem:[%s140 + $0xb] sm:$0x1] %v331
        %s338 = sadd.s32 %s147, 12
        %s339 = sld [smem:[#allocation3 + %s338]]
        %s340 = sadd.s32 %s144, 96
        // While loop
        $region113: #{tpu_custom_call.1} parent=23 // loop_pre_header
          _
        $region114: #{tpu_custom_call.1} parent=23 // loop_header
          %s342 = sphi 0, %s344
          %p343 = scmp.ge.s32.totalorder %s342, %s339
          %v347 = vphi 0.0, %v352
        $region115: #{tpu_custom_call.1} parent=23 // loop_header_branch
          %346 = sbr.rel (%p343) target = $region119
        $region116: #{tpu_custom_call.1} parent=23 // loop_body
          %s348 = sadd.s32 %s340, %s342
          %s349 = sld [smem:[#allocation4 + %s348]]
          %s350 = scalar_lea.vmem [#allocation5], %s349
          %v351 = vld [vmem:[%s350] sm:$0x1]
          %v352 = vadd.f32 %v347, %v351
        $region117: #{tpu_custom_call.1} parent=23 // loop_footer
          %s344 = sadd.s32 %s342, 1
        $region118: #{tpu_custom_call.1} parent=23 // loop_footer_branch
          %341 = sbr.rel target = $region114
        $region119: #{tpu_custom_call.1} parent=23 // loop_exit
          _
        %353 = vst [vmem:[%s140 + $0xc] sm:$0x1] %v347
        %s354 = sadd.s32 %s147, 13
        %s355 = sld [smem:[#allocation3 + %s354]]
        %s356 = sadd.s32 %s144, 104
        // While loop
        $region120: #{tpu_custom_call.1} parent=23 // loop_pre_header
          _
        $region121: #{tpu_custom_call.1} parent=23 // loop_header
          %s358 = sphi 0, %s360
          %p359 = scmp.ge.s32.totalorder %s358, %s355
          %v363 = vphi 0.0, %v368
        $region122: #{tpu_custom_call.1} parent=23 // loop_header_branch
          %362 = sbr.rel (%p359) target = $region126
        $region123: #{tpu_custom_call.1} parent=23 // loop_body
          %s364 = sadd.s32 %s356, %s358
          %s365 = sld [smem:[#allocation4 + %s364]]
          %s366 = scalar_lea.vmem [#allocation5], %s365
          %v367 = vld [vmem:[%s366] sm:$0x1]
          %v368 = vadd.f32 %v363, %v367
        $region124: #{tpu_custom_call.1} parent=23 // loop_footer
          %s360 = sadd.s32 %s358, 1
        $region125: #{tpu_custom_call.1} parent=23 // loop_footer_branch
          %357 = sbr.rel target = $region121
        $region126: #{tpu_custom_call.1} parent=23 // loop_exit
          _
        %369 = vst [vmem:[%s140 + $0xd] sm:$0x1] %v363
        %s370 = sadd.s32 %s147, 14
        %s371 = sld [smem:[#allocation3 + %s370]]
        %s372 = sadd.s32 %s144, 112
        // While loop
        $region127: #{tpu_custom_call.1} parent=23 // loop_pre_header
          _
        $region128: #{tpu_custom_call.1} parent=23 // loop_header
          %s374 = sphi 0, %s376
          %p375 = scmp.ge.s32.totalorder %s374, %s371
          %v379 = vphi 0.0, %v384
        $region129: #{tpu_custom_call.1} parent=23 // loop_header_branch
          %378 = sbr.rel (%p375) target = $region133
        $region130: #{tpu_custom_call.1} parent=23 // loop_body
          %s380 = sadd.s32 %s372, %s374
          %s381 = sld [smem:[#allocation4 + %s380]]
          %s382 = scalar_lea.vmem [#allocation5], %s381
          %v383 = vld [vmem:[%s382] sm:$0x1]
          %v384 = vadd.f32 %v379, %v383
        $region131: #{tpu_custom_call.1} parent=23 // loop_footer
          %s376 = sadd.s32 %s374, 1
        $region132: #{tpu_custom_call.1} parent=23 // loop_footer_branch
          %373 = sbr.rel target = $region128
        $region133: #{tpu_custom_call.1} parent=23 // loop_exit
          _
        %385 = vst [vmem:[%s140 + $0xe] sm:$0x1] %v379
        %s386 = sadd.s32 %s147, 15
        %s387 = sld [smem:[#allocation3 + %s386]]
        %s388 = sadd.s32 %s144, 120
        // While loop
        $region134: #{tpu_custom_call.1} parent=23 // loop_pre_header
          _
        $region135: #{tpu_custom_call.1} parent=23 // loop_header
          %s390 = sphi 0, %s392
          %p391 = scmp.ge.s32.totalorder %s390, %s387
          %v395 = vphi 0.0, %v400
        $region136: #{tpu_custom_call.1} parent=23 // loop_header_branch
          %394 = sbr.rel (%p391) target = $region140
        $region137: #{tpu_custom_call.1} parent=23 // loop_body
          %s396 = sadd.s32 %s388, %s390
          %s397 = sld [smem:[#allocation4 + %s396]]
          %s398 = scalar_lea.vmem [#allocation5], %s397
          %v399 = vld [vmem:[%s398] sm:$0x1]
          %v400 = vadd.f32 %v395, %v399
        $region138: #{tpu_custom_call.1} parent=23 // loop_footer
          %s392 = sadd.s32 %s390, 1
        $region139: #{tpu_custom_call.1} parent=23 // loop_footer_branch
          %389 = sbr.rel target = $region135
        $region140: #{tpu_custom_call.1} parent=23 // loop_exit
          _
        %401 = vst [vmem:[%s140 + $0xf] sm:$0x1] %v395
        %s402 = sadd.s32 %s147, 16
        %s403 = sld [smem:[#allocation3 + %s402]]
        %s404 = sadd.s32 %s144, 128
        // While loop
        $region141: #{tpu_custom_call.1} parent=23 // loop_pre_header
          _
        $region142: #{tpu_custom_call.1} parent=23 // loop_header
          %s406 = sphi 0, %s408
          %p407 = scmp.ge.s32.totalorder %s406, %s403
          %v411 = vphi 0.0, %v416
        $region143: #{tpu_custom_call.1} parent=23 // loop_header_branch
          %410 = sbr.rel (%p407) target = $region147
        $region144: #{tpu_custom_call.1} parent=23 // loop_body
          %s412 = sadd.s32 %s404, %s406
          %s413 = sld [smem:[#allocation4 + %s412]]
          %s414 = scalar_lea.vmem [#allocation5], %s413
          %v415 = vld [vmem:[%s414] sm:$0x1]
          %v416 = vadd.f32 %v411, %v415
        $region145: #{tpu_custom_call.1} parent=23 // loop_footer
          %s408 = sadd.s32 %s406, 1
        $region146: #{tpu_custom_call.1} parent=23 // loop_footer_branch
          %405 = sbr.rel target = $region142
        $region147: #{tpu_custom_call.1} parent=23 // loop_exit
          _
        %417 = vst [vmem:[%s140 + $0x10] sm:$0x1] %v411
        %s418 = sadd.s32 %s147, 17
        %s419 = sld [smem:[#allocation3 + %s418]]
        %s420 = sadd.s32 %s144, 136
        // While loop
        $region148: #{tpu_custom_call.1} parent=23 // loop_pre_header
          _
        $region149: #{tpu_custom_call.1} parent=23 // loop_header
          %s422 = sphi 0, %s424
          %p423 = scmp.ge.s32.totalorder %s422, %s419
          %v427 = vphi 0.0, %v432
        $region150: #{tpu_custom_call.1} parent=23 // loop_header_branch
          %426 = sbr.rel (%p423) target = $region154
        $region151: #{tpu_custom_call.1} parent=23 // loop_body
          %s428 = sadd.s32 %s420, %s422
          %s429 = sld [smem:[#allocation4 + %s428]]
          %s430 = scalar_lea.vmem [#allocation5], %s429
          %v431 = vld [vmem:[%s430] sm:$0x1]
          %v432 = vadd.f32 %v427, %v431
        $region152: #{tpu_custom_call.1} parent=23 // loop_footer
          %s424 = sadd.s32 %s422, 1
        $region153: #{tpu_custom_call.1} parent=23 // loop_footer_branch
          %421 = sbr.rel target = $region149
        $region154: #{tpu_custom_call.1} parent=23 // loop_exit
          _
        %433 = vst [vmem:[%s140 + $0x11] sm:$0x1] %v427
        %s434 = sadd.s32 %s147, 18
        %s435 = sld [smem:[#allocation3 + %s434]]
        %s436 = sadd.s32 %s144, 144
        // While loop
        $region155: #{tpu_custom_call.1} parent=23 // loop_pre_header
          _
        $region156: #{tpu_custom_call.1} parent=23 // loop_header
          %s438 = sphi 0, %s440
          %p439 = scmp.ge.s32.totalorder %s438, %s435
          %v443 = vphi 0.0, %v448
        $region157: #{tpu_custom_call.1} parent=23 // loop_header_branch
          %442 = sbr.rel (%p439) target = $region161
        $region158: #{tpu_custom_call.1} parent=23 // loop_body
          %s444 = sadd.s32 %s436, %s438
          %s445 = sld [smem:[#allocation4 + %s444]]
          %s446 = scalar_lea.vmem [#allocation5], %s445
          %v447 = vld [vmem:[%s446] sm:$0x1]
          %v448 = vadd.f32 %v443, %v447
        $region159: #{tpu_custom_call.1} parent=23 // loop_footer
          %s440 = sadd.s32 %s438, 1
        $region160: #{tpu_custom_call.1} parent=23 // loop_footer_branch
          %437 = sbr.rel target = $region156
        $region161: #{tpu_custom_call.1} parent=23 // loop_exit
          _
        %449 = vst [vmem:[%s140 + $0x12] sm:$0x1] %v443
        %s450 = sadd.s32 %s147, 19
        %s451 = sld [smem:[#allocation3 + %s450]]
        %s452 = sadd.s32 %s144, 152
        // While loop
        $region162: #{tpu_custom_call.1} parent=23 // loop_pre_header
          _
        $region163: #{tpu_custom_call.1} parent=23 // loop_header
          %s454 = sphi 0, %s456
          %p455 = scmp.ge.s32.totalorder %s454, %s451
          %v459 = vphi 0.0, %v464
        $region164: #{tpu_custom_call.1} parent=23 // loop_header_branch
          %458 = sbr.rel (%p455) target = $region168
        $region165: #{tpu_custom_call.1} parent=23 // loop_body
          %s460 = sadd.s32 %s452, %s454
          %s461 = sld [smem:[#allocation4 + %s460]]
          %s462 = scalar_lea.vmem [#allocation5], %s461
          %v463 = vld [vmem:[%s462] sm:$0x1]
          %v464 = vadd.f32 %v459, %v463
        $region166: #{tpu_custom_call.1} parent=23 // loop_footer
          %s456 = sadd.s32 %s454, 1
        $region167: #{tpu_custom_call.1} parent=23 // loop_footer_branch
          %453 = sbr.rel target = $region163
        $region168: #{tpu_custom_call.1} parent=23 // loop_exit
          _
        %465 = vst [vmem:[%s140 + $0x13] sm:$0x1] %v459
        %s466 = sadd.s32 %s147, 20
        %s467 = sld [smem:[#allocation3 + %s466]]
        %s468 = sadd.s32 %s144, 160
        // While loop
        $region169: #{tpu_custom_call.1} parent=23 // loop_pre_header
          _
        $region170: #{tpu_custom_call.1} parent=23 // loop_header
          %s470 = sphi 0, %s472
          %p471 = scmp.ge.s32.totalorder %s470, %s467
          %v475 = vphi 0.0, %v480
        $region171: #{tpu_custom_call.1} parent=23 // loop_header_branch
          %474 = sbr.rel (%p471) target = $region175
        $region172: #{tpu_custom_call.1} parent=23 // loop_body
          %s476 = sadd.s32 %s468, %s470
          %s477 = sld [smem:[#allocation4 + %s476]]
          %s478 = scalar_lea.vmem [#allocation5], %s477
          %v479 = vld [vmem:[%s478] sm:$0x1]
          %v480 = vadd.f32 %v475, %v479
        $region173: #{tpu_custom_call.1} parent=23 // loop_footer
          %s472 = sadd.s32 %s470, 1
        $region174: #{tpu_custom_call.1} parent=23 // loop_footer_branch
          %469 = sbr.rel target = $region170
        $region175: #{tpu_custom_call.1} parent=23 // loop_exit
          _
        %481 = vst [vmem:[%s140 + $0x14] sm:$0x1] %v475
        %s482 = sadd.s32 %s147, 21
        %s483 = sld [smem:[#allocation3 + %s482]]
        %s484 = sadd.s32 %s144, 168
        // While loop
        $region176: #{tpu_custom_call.1} parent=23 // loop_pre_header
          _
        $region177: #{tpu_custom_call.1} parent=23 // loop_header
          %s486 = sphi 0, %s488
          %p487 = scmp.ge.s32.totalorder %s486, %s483
          %v491 = vphi 0.0, %v496
        $region178: #{tpu_custom_call.1} parent=23 // loop_header_branch
          %490 = sbr.rel (%p487) target = $region182
        $region179: #{tpu_custom_call.1} parent=23 // loop_body
          %s492 = sadd.s32 %s484, %s486
          %s493 = sld [smem:[#allocation4 + %s492]]
          %s494 = scalar_lea.vmem [#allocation5], %s493
          %v495 = vld [vmem:[%s494] sm:$0x1]
          %v496 = vadd.f32 %v491, %v495
        $region180: #{tpu_custom_call.1} parent=23 // loop_footer
          %s488 = sadd.s32 %s486, 1
        $region181: #{tpu_custom_call.1} parent=23 // loop_footer_branch
          %485 = sbr.rel target = $region177
        $region182: #{tpu_custom_call.1} parent=23 // loop_exit
          _
        %497 = vst [vmem:[%s140 + $0x15] sm:$0x1] %v491
        %s498 = sadd.s32 %s147, 22
        %s499 = sld [smem:[#allocation3 + %s498]]
        %s500 = sadd.s32 %s144, 176
        // While loop
        $region183: #{tpu_custom_call.1} parent=23 // loop_pre_header
          _
        $region184: #{tpu_custom_call.1} parent=23 // loop_header
          %s502 = sphi 0, %s504
          %p503 = scmp.ge.s32.totalorder %s502, %s499
          %v507 = vphi 0.0, %v512
        $region185: #{tpu_custom_call.1} parent=23 // loop_header_branch
          %506 = sbr.rel (%p503) target = $region189
        $region186: #{tpu_custom_call.1} parent=23 // loop_body
          %s508 = sadd.s32 %s500, %s502
          %s509 = sld [smem:[#allocation4 + %s508]]
          %s510 = scalar_lea.vmem [#allocation5], %s509
          %v511 = vld [vmem:[%s510] sm:$0x1]
          %v512 = vadd.f32 %v507, %v511
        $region187: #{tpu_custom_call.1} parent=23 // loop_footer
          %s504 = sadd.s32 %s502, 1
        $region188: #{tpu_custom_call.1} parent=23 // loop_footer_branch
          %501 = sbr.rel target = $region184
        $region189: #{tpu_custom_call.1} parent=23 // loop_exit
          _
        %513 = vst [vmem:[%s140 + $0x16] sm:$0x1] %v507
        %s514 = sadd.s32 %s147, 23
        %s515 = sld [smem:[#allocation3 + %s514]]
        %s516 = sadd.s32 %s144, 184
        // While loop
        $region190: #{tpu_custom_call.1} parent=23 // loop_pre_header
          _
        $region191: #{tpu_custom_call.1} parent=23 // loop_header
          %s518 = sphi 0, %s520
          %p519 = scmp.ge.s32.totalorder %s518, %s515
          %v523 = vphi 0.0, %v528
        $region192: #{tpu_custom_call.1} parent=23 // loop_header_branch
          %522 = sbr.rel (%p519) target = $region196
        $region193: #{tpu_custom_call.1} parent=23 // loop_body
          %s524 = sadd.s32 %s516, %s518
          %s525 = sld [smem:[#allocation4 + %s524]]
          %s526 = scalar_lea.vmem [#allocation5], %s525
          %v527 = vld [vmem:[%s526] sm:$0x1]
          %v528 = vadd.f32 %v523, %v527
        $region194: #{tpu_custom_call.1} parent=23 // loop_footer
          %s520 = sadd.s32 %s518, 1
        $region195: #{tpu_custom_call.1} parent=23 // loop_footer_branch
          %517 = sbr.rel target = $region191
        $region196: #{tpu_custom_call.1} parent=23 // loop_exit
          _
        %529 = vst [vmem:[%s140 + $0x17] sm:$0x1] %v523
        %s530 = sadd.s32 %s147, 24
        %s531 = sld [smem:[#allocation3 + %s530]]
        %s532 = sadd.s32 %s144, 192
        // While loop
        $region197: #{tpu_custom_call.1} parent=23 // loop_pre_header
          _
        $region198: #{tpu_custom_call.1} parent=23 // loop_header
          %s534 = sphi 0, %s536
          %p535 = scmp.ge.s32.totalorder %s534, %s531
          %v539 = vphi 0.0, %v544
        $region199: #{tpu_custom_call.1} parent=23 // loop_header_branch
          %538 = sbr.rel (%p535) target = $region203
        $region200: #{tpu_custom_call.1} parent=23 // loop_body
          %s540 = sadd.s32 %s532, %s534
          %s541 = sld [smem:[#allocation4 + %s540]]
          %s542 = scalar_lea.vmem [#allocation5], %s541
          %v543 = vld [vmem:[%s542] sm:$0x1]
          %v544 = vadd.f32 %v539, %v543
        $region201: #{tpu_custom_call.1} parent=23 // loop_footer
          %s536 = sadd.s32 %s534, 1
        $region202: #{tpu_custom_call.1} parent=23 // loop_footer_branch
          %533 = sbr.rel target = $region198
        $region203: #{tpu_custom_call.1} parent=23 // loop_exit
          _
        %545 = vst [vmem:[%s140 + $0x18] sm:$0x1] %v539
        %s546 = sadd.s32 %s147, 25
        %s547 = sld [smem:[#allocation3 + %s546]]
        %s548 = sadd.s32 %s144, 200
        // While loop
        $region204: #{tpu_custom_call.1} parent=23 // loop_pre_header
          _
        $region205: #{tpu_custom_call.1} parent=23 // loop_header
          %s550 = sphi 0, %s552
          %p551 = scmp.ge.s32.totalorder %s550, %s547
          %v555 = vphi 0.0, %v560
        $region206: #{tpu_custom_call.1} parent=23 // loop_header_branch
          %554 = sbr.rel (%p551) target = $region210
        $region207: #{tpu_custom_call.1} parent=23 // loop_body
          %s556 = sadd.s32 %s548, %s550
          %s557 = sld [smem:[#allocation4 + %s556]]
          %s558 = scalar_lea.vmem [#allocation5], %s557
          %v559 = vld [vmem:[%s558] sm:$0x1]
          %v560 = vadd.f32 %v555, %v559
        $region208: #{tpu_custom_call.1} parent=23 // loop_footer
          %s552 = sadd.s32 %s550, 1
        $region209: #{tpu_custom_call.1} parent=23 // loop_footer_branch
          %549 = sbr.rel target = $region205
        $region210: #{tpu_custom_call.1} parent=23 // loop_exit
          _
        %561 = vst [vmem:[%s140 + $0x19] sm:$0x1] %v555
        %s562 = sadd.s32 %s147, 26
        %s563 = sld [smem:[#allocation3 + %s562]]
        %s564 = sadd.s32 %s144, 208
        // While loop
        $region211: #{tpu_custom_call.1} parent=23 // loop_pre_header
          _
        $region212: #{tpu_custom_call.1} parent=23 // loop_header
          %s566 = sphi 0, %s568
          %p567 = scmp.ge.s32.totalorder %s566, %s563
          %v571 = vphi 0.0, %v576
        $region213: #{tpu_custom_call.1} parent=23 // loop_header_branch
          %570 = sbr.rel (%p567) target = $region217
        $region214: #{tpu_custom_call.1} parent=23 // loop_body
          %s572 = sadd.s32 %s564, %s566
          %s573 = sld [smem:[#allocation4 + %s572]]
          %s574 = scalar_lea.vmem [#allocation5], %s573
          %v575 = vld [vmem:[%s574] sm:$0x1]
          %v576 = vadd.f32 %v571, %v575
        $region215: #{tpu_custom_call.1} parent=23 // loop_footer
          %s568 = sadd.s32 %s566, 1
        $region216: #{tpu_custom_call.1} parent=23 // loop_footer_branch
          %565 = sbr.rel target = $region212
        $region217: #{tpu_custom_call.1} parent=23 // loop_exit
          _
        %577 = vst [vmem:[%s140 + $0x1a] sm:$0x1] %v571
        %s578 = sadd.s32 %s147, 27
        %s579 = sld [smem:[#allocation3 + %s578]]
        %s580 = sadd.s32 %s144, 216
        // While loop
        $region218: #{tpu_custom_call.1} parent=23 // loop_pre_header
          _
        $region219: #{tpu_custom_call.1} parent=23 // loop_header
          %s582 = sphi 0, %s584
          %p583 = scmp.ge.s32.totalorder %s582, %s579
          %v587 = vphi 0.0, %v592
        $region220: #{tpu_custom_call.1} parent=23 // loop_header_branch
          %586 = sbr.rel (%p583) target = $region224
        $region221: #{tpu_custom_call.1} parent=23 // loop_body
          %s588 = sadd.s32 %s580, %s582
          %s589 = sld [smem:[#allocation4 + %s588]]
          %s590 = scalar_lea.vmem [#allocation5], %s589
          %v591 = vld [vmem:[%s590] sm:$0x1]
          %v592 = vadd.f32 %v587, %v591
        $region222: #{tpu_custom_call.1} parent=23 // loop_footer
          %s584 = sadd.s32 %s582, 1
        $region223: #{tpu_custom_call.1} parent=23 // loop_footer_branch
          %581 = sbr.rel target = $region219
        $region224: #{tpu_custom_call.1} parent=23 // loop_exit
          _
        %593 = vst [vmem:[%s140 + $0x1b] sm:$0x1] %v587
        %s594 = sadd.s32 %s147, 28
        %s595 = sld [smem:[#allocation3 + %s594]]
        %s596 = sadd.s32 %s144, 224
        // While loop
        $region225: #{tpu_custom_call.1} parent=23 // loop_pre_header
          _
        $region226: #{tpu_custom_call.1} parent=23 // loop_header
          %s598 = sphi 0, %s600
          %p599 = scmp.ge.s32.totalorder %s598, %s595
          %v603 = vphi 0.0, %v608
        $region227: #{tpu_custom_call.1} parent=23 // loop_header_branch
          %602 = sbr.rel (%p599) target = $region231
        $region228: #{tpu_custom_call.1} parent=23 // loop_body
          %s604 = sadd.s32 %s596, %s598
          %s605 = sld [smem:[#allocation4 + %s604]]
          %s606 = scalar_lea.vmem [#allocation5], %s605
          %v607 = vld [vmem:[%s606] sm:$0x1]
          %v608 = vadd.f32 %v603, %v607
        $region229: #{tpu_custom_call.1} parent=23 // loop_footer
          %s600 = sadd.s32 %s598, 1
        $region230: #{tpu_custom_call.1} parent=23 // loop_footer_branch
          %597 = sbr.rel target = $region226
        $region231: #{tpu_custom_call.1} parent=23 // loop_exit
          _
        %609 = vst [vmem:[%s140 + $0x1c] sm:$0x1] %v603
        %s610 = sadd.s32 %s147, 29
        %s611 = sld [smem:[#allocation3 + %s610]]
        %s612 = sadd.s32 %s144, 232
        // While loop
        $region232: #{tpu_custom_call.1} parent=23 // loop_pre_header
          _
        $region233: #{tpu_custom_call.1} parent=23 // loop_header
          %s614 = sphi 0, %s616
          %p615 = scmp.ge.s32.totalorder %s614, %s611
          %v619 = vphi 0.0, %v624
        $region234: #{tpu_custom_call.1} parent=23 // loop_header_branch
          %618 = sbr.rel (%p615) target = $region238
        $region235: #{tpu_custom_call.1} parent=23 // loop_body
          %s620 = sadd.s32 %s612, %s614
          %s621 = sld [smem:[#allocation4 + %s620]]
          %s622 = scalar_lea.vmem [#allocation5], %s621
          %v623 = vld [vmem:[%s622] sm:$0x1]
          %v624 = vadd.f32 %v619, %v623
        $region236: #{tpu_custom_call.1} parent=23 // loop_footer
          %s616 = sadd.s32 %s614, 1
        $region237: #{tpu_custom_call.1} parent=23 // loop_footer_branch
          %613 = sbr.rel target = $region233
        $region238: #{tpu_custom_call.1} parent=23 // loop_exit
          _
        %625 = vst [vmem:[%s140 + $0x1d] sm:$0x1] %v619
        %s626 = sadd.s32 %s147, 30
        %s627 = sld [smem:[#allocation3 + %s626]]
        %s628 = sadd.s32 %s144, 240
        // While loop
        $region239: #{tpu_custom_call.1} parent=23 // loop_pre_header
          _
        $region240: #{tpu_custom_call.1} parent=23 // loop_header
          %s630 = sphi 0, %s632
          %p631 = scmp.ge.s32.totalorder %s630, %s627
          %v635 = vphi 0.0, %v640
        $region241: #{tpu_custom_call.1} parent=23 // loop_header_branch
          %634 = sbr.rel (%p631) target = $region245
        $region242: #{tpu_custom_call.1} parent=23 // loop_body
          %s636 = sadd.s32 %s628, %s630
          %s637 = sld [smem:[#allocation4 + %s636]]
          %s638 = scalar_lea.vmem [#allocation5], %s637
          %v639 = vld [vmem:[%s638] sm:$0x1]
          %v640 = vadd.f32 %v635, %v639
        $region243: #{tpu_custom_call.1} parent=23 // loop_footer
          %s632 = sadd.s32 %s630, 1
        $region244: #{tpu_custom_call.1} parent=23 // loop_footer_branch
          %629 = sbr.rel target = $region240
        $region245: #{tpu_custom_call.1} parent=23 // loop_exit
          _
        %641 = vst [vmem:[%s140 + $0x1e] sm:$0x1] %v635
        %s642 = sadd.s32 %s147, 31
        %s643 = sld [smem:[#allocation3 + %s642]]
        %s644 = sadd.s32 %s144, 248
        // While loop
        $region246: #{tpu_custom_call.1} parent=23 // loop_pre_header
          _
        $region247: #{tpu_custom_call.1} parent=23 // loop_header
          %s646 = sphi 0, %s648
          %p647 = scmp.ge.s32.totalorder %s646, %s643
          %v651 = vphi 0.0, %v656
        $region248: #{tpu_custom_call.1} parent=23 // loop_header_branch
          %650 = sbr.rel (%p647) target = $region252
        $region249: #{tpu_custom_call.1} parent=23 // loop_body
          %s652 = sadd.s32 %s644, %s646
          %s653 = sld [smem:[#allocation4 + %s652]]
          %s654 = scalar_lea.vmem [#allocation5], %s653
          %v655 = vld [vmem:[%s654] sm:$0x1]
          %v656 = vadd.f32 %v651, %v655
        $region250: #{tpu_custom_call.1} parent=23 // loop_footer
          %s648 = sadd.s32 %s646, 1
        $region251: #{tpu_custom_call.1} parent=23 // loop_footer_branch
          %645 = sbr.rel target = $region247
        $region252: #{tpu_custom_call.1} parent=23 // loop_exit
          _
        %657 = vst [vmem:[%s140 + $0x1f] sm:$0x1] %v651
        %s658 = sand.u32 %s74, 1
        %s659 = scalar_lea.sflag [#allocation7], %s658
        %s660 = sand.u32 %s74, 1
        %s661 = smul.addr %s660, 32
        %s662 = scalar_lea.vmem [#allocation8], %s661
        // Predicated region
        $region253: #{tpu_custom_call.1} parent=23 // pred_check
          %p663 = pneg %p84
        $region254: #{tpu_custom_call.1} parent=23 // pred_check_branch
          %665 = sbr.rel (%p663) target = $region256
        $region255: #{tpu_custom_call.1} parent=23 // pred_region
          %s666 = smul.u32 4, %s36
          %668 = vsyncadd %s659, 0
          %s669 = smul.addr %s35, 4
          %s670 = sadd.s32 %s666, %s669
          %s671 = smul.addr %s670, 8
          %s672 = scalar_lea.hbm %s3, %s671
          %s673 = sshll.u32 %s662, 4
          %s674 = int_to_ptr.vmem [resolvable:$true] %s673
          %s675 = sshll.u32 %s672, 4
          %s676 = int_to_ptr.hbm [resolvable:$true] %s675
          %681 = dma.vmem_to_hbm [thread:$0]  %s674, 512, %s676, %s659, 128, 128, 8
        $region256: #{tpu_custom_call.1} parent=23 // pred_fallthru
          _
      $region24: #{tpu_custom_call.1} parent=5 // pred_fallthru
        _
      %p682 = scmp.le.s32.totalorder 2, %s26
      // Predicated region
      $region257: #{tpu_custom_call.1} parent=5 // pred_check
        %p683 = pneg %p682
      $region258: #{tpu_custom_call.1} parent=5 // pred_check_branch
        %685 = sbr.rel (%p683) target = $region260
      $region259: #{tpu_custom_call.1} parent=5 // pred_region
        %s686 = ssub.s32 %s26, 2
        // Predicated region
        $region261: #{tpu_custom_call.1} parent=259 // pred_check
          %p687 = pneg %p90
        $region262: #{tpu_custom_call.1} parent=259 // pred_check_branch
          %689 = sbr.rel (%p687) target = $region264
        $region263: #{tpu_custom_call.1} parent=259 // pred_region
          %s690 = sand.u32 %s75, 1
          %s691 = scalar_lea.sflag [#allocation7], %s690
          %s692 = sand.u32 %s75, 1
          %s693 = smul.addr %s692, 32
          %s694 = scalar_lea.vmem [#allocation8], %s693
          %696 = dma.done %s691, 512
        $region264: #{tpu_custom_call.1} parent=259 // pred_fallthru
          _
      $region260: #{tpu_custom_call.1} parent=5 // pred_fallthru
        _
    $region6: #{tpu_custom_call.1} parent=1 // loop_footer
      %s30 = sadd.s32 1, %s26
    $region7: #{tpu_custom_call.1} parent=1 // loop_footer_branch
      %25 = sbr.rel target = $region3
    $region8: #{tpu_custom_call.1} parent=1 // loop_exit
      _
    %697 = vsyncpa [#allocation6], 1
    %s698 = scalar_lea.sflag [#allocation6], 1
    %699 = vsyncpa %s698, 1
    %700 = vsyncpa [#allocation7], 1
    %s701 = scalar_lea.sflag [#allocation7], 1
    %702 = vsyncpa %s701, 1

</llo_original>
